<compile_context>
chip_gen: v7x
topology: tpu7x:2x2x1
jax: 0.10.0
libtpu: 0.0.40
codegen_flags: <defaults>
</compile_context>

<pallas_src>
import functools

import jax
import jax.numpy as jnp
from jax import lax
from jax.experimental import pallas as pl
from jax.experimental.pallas import tpu as pltpu

INPUT_SIZE = 957
H1, H2, OUT = 100, 50, 3
H1P, H2P, OUT8 = 128, 128, 8            # padded feature dims
BN_EPS = 1e-5
TB_DEFAULT = 2048                        # batch rows per tile
VMEM_LIMIT = 32 * 1024 * 1024


def _round_up(x, m):
    return (x + m - 1) // m * m


def _cdiv(a, b):
    return (a + b - 1) // b


def _fold_bn_vals(s, sq, g, be, inv_n):
    """Per-feature folded BN: scale = g*rsqrt(var+eps), shift = be - mean*scale."""
    mean = s * inv_n
    var = jnp.maximum(sq * inv_n - mean * mean, 0.0)   # clamp E[x^2]-E[x]^2 >= 0
    scale = g * lax.rsqrt(var + BN_EPS)
    shift = be - mean * scale
    return scale, shift


# --------------------------------------------------------------------------
# Kernel 1: fc0 (no bias, in-kernel bf16 cast of x) + BN1 stats accumulation.
# --------------------------------------------------------------------------
def _k1_fc0_stats(x_ref, w0_ref, h1_ref, s_ref, sq_ref, *, n_valid, tb, ragged):
    i = pl.program_id(0)
    h1 = jnp.dot(x_ref[...].astype(jnp.bfloat16), w0_ref[...],
                 preferred_element_type=jnp.float32)
    h1_ref[...] = h1.astype(h1_ref.dtype)

    @pl.when(i == 0)
    def _():
        s_ref[...] = jnp.zeros_like(s_ref)
        sq_ref[...] = jnp.zeros_like(sq_ref)

    if ragged:
        # Rows past n_valid in the boundary tile hold unspecified data; mask
        # them out of the statistics.
        rowid = i * tb + lax.broadcasted_iota(jnp.int32, (tb, 1), 0)
        hs = jnp.where(rowid < n_valid, h1, 0.0)
    else:
        hs = h1
    s_ref[...] += jnp.sum(hs, axis=0, keepdims=True)
    sq_ref[...] += jnp.sum(hs * hs, axis=0, keepdims=True)


# --------------------------------------------------------------------------
# Kernel 2: folded BN1 + ReLU + fc1 (no bias), accumulate BN2 stats only
#           (h2 is never written back to HBM).
# --------------------------------------------------------------------------
def _k2_bn1_fc1_stats(h1_ref, s1_ref, sq1_ref, g1_ref, be1_ref, w1_ref,
                      s2_ref, sq2_ref, *, inv_n, n_valid, tb, ragged):
    i = pl.program_id(0)

    @pl.when(i == 0)
    def _():
        s2_ref[...] = jnp.zeros_like(s2_ref)
        sq2_ref[...] = jnp.zeros_like(sq2_ref)

    sc1, sh1 = _fold_bn_vals(s1_ref[...], sq1_ref[...], g1_ref[...],
                             be1_ref[...], inv_n)
    a = jnp.maximum(h1_ref[...].astype(jnp.float32) * sc1 + sh1, 0.0)
    h2 = jnp.dot(a.astype(jnp.bfloat16), w1_ref[...],
                 preferred_element_type=jnp.float32)

    if ragged:
        rowid = i * tb + lax.broadcasted_iota(jnp.int32, (tb, 1), 0)
        h2 = jnp.where(rowid < n_valid, h2, 0.0)

    s2_ref[...] += jnp.sum(h2, axis=0, keepdims=True)
    sq2_ref[...] += jnp.sum(h2 * h2, axis=0, keepdims=True)


# --------------------------------------------------------------------------
# Kernel 3: folded BN1 + ReLU + fc1 (recompute h2) + folded BN2 + ReLU + fc2.
#           Narrow (tb, 8) f32 output.
# --------------------------------------------------------------------------
def _k3_bn_fc(h1_ref, s1_ref, sq1_ref, g1_ref, be1_ref, w1_ref,
              s2_ref, sq2_ref, g2_ref, be2_ref, w2_ref, b2_ref,
              o_ref, *, inv_n):
    sc1, sh1 = _fold_bn_vals(s1_ref[...], sq1_ref[...], g1_ref[...],
                             be1_ref[...], inv_n)
    sc2, sh2 = _fold_bn_vals(s2_ref[...], sq2_ref[...], g2_ref[...],
                             be2_ref[...], inv_n)

    a1 = jnp.maximum(h1_ref[...].astype(jnp.float32) * sc1 + sh1, 0.0)
    h2 = jnp.dot(a1.astype(jnp.bfloat16), w1_ref[...],
                 preferred_element_type=jnp.float32)
    a2 = jnp.maximum(h2 * sc2 + sh2, 0.0)
    o_ref[...] = (jnp.dot(a2.astype(jnp.bfloat16), w2_ref[...],
                          preferred_element_type=jnp.float32) + b2_ref[...])


# --------------------------------------------------------------------------
# Wrapper
# --------------------------------------------------------------------------
@functools.partial(jax.jit, static_argnames=("block_rows",))
def model_forward(x, params, block_rows=TB_DEFAULT):
    """x: (..., 957) float -> (N, 3) float32. Training-mode BatchNorm."""
    x2d = x.reshape(-1, INPUT_SIZE)
    n = x2d.shape[0]
    tb = min(block_rows, _round_up(n, 8))
    nt = _cdiv(n, tb)
    ragged = (n % tb) != 0
    inv_n = 1.0 / n

    row = lambda c: pl.BlockSpec((tb, c), lambda i: (i, 0))    # per-tile
    res = lambda s: pl.BlockSpec(s, lambda i: (0, 0))          # resident

    # ---- pass 1: fc0 + BN1 stats ------------------------------------------
    h1, s1, sq1 = pl.pallas_call(
        functools.partial(_k1_fc0_stats, n_valid=n, tb=tb, ragged=ragged),
        grid_spec=pltpu.PrefetchScalarGridSpec(
            num_scalar_prefetch=0, grid=(nt,),
            in_specs=[row(INPUT_SIZE), res((INPUT_SIZE, H1P))],
            out_specs=[row(H1P), res((1, H1P)), res((1, H1P))]),
        out_shape=[jax.ShapeDtypeStruct((n, H1P), jnp.bfloat16),
                   jax.ShapeDtypeStruct((1, H1P), jnp.float32),
                   jax.ShapeDtypeStruct((1, H1P), jnp.float32)],
        compiler_params=pltpu.CompilerParams(
            dimension_semantics=("arbitrary",),
            vmem_limit_bytes=VMEM_LIMIT),
    )(x2d, params["w0"])

    # ---- pass 2: folded BN1 + ReLU + fc1, BN2 stats only --------------------
    s2, sq2 = pl.pallas_call(
        functools.partial(_k2_bn1_fc1_stats, inv_n=inv_n, n_valid=n, tb=tb,
                          ragged=ragged),
        grid_spec=pltpu.PrefetchScalarGridSpec(
            num_scalar_prefetch=0, grid=(nt,),
            in_specs=[row(H1P),
                      res((1, H1P)), res((1, H1P)), res((1, H1P)), res((1, H1P)),
                      res((H1P, H2P))],
            out_specs=[res((1, H2P)), res((1, H2P))]),
        out_shape=[jax.ShapeDtypeStruct((1, H2P), jnp.float32),
                   jax.ShapeDtypeStruct((1, H2P), jnp.float32)],
        compiler_params=pltpu.CompilerParams(
            dimension_semantics=("arbitrary",),
            vmem_limit_bytes=VMEM_LIMIT),
    )(h1, s1, sq1, params["g1"], params["be1"], params["w1"])

    # ---- pass 3: folded BN1/BN2 + ReLU + fc2, narrow output ----------------
    out = pl.pallas_call(
        functools.partial(_k3_bn_fc, inv_n=inv_n),
        grid_spec=pltpu.PrefetchScalarGridSpec(
            num_scalar_prefetch=0, grid=(nt,),
            in_specs=[row(H1P),
                      res((1, H1P)), res((1, H1P)), res((1, H1P)), res((1, H1P)),
                      res((H1P, H2P)),
                      res((1, H2P)), res((1, H2P)), res((1, H2P)), res((1, H2P)),
                      res((H2P, OUT8)), res((1, OUT8))],
            out_specs=row(OUT8)),
        out_shape=jax.ShapeDtypeStruct((n, OUT8), jnp.float32),
        compiler_params=pltpu.CompilerParams(
            dimension_semantics=("parallel",),
            vmem_limit_bytes=VMEM_LIMIT),
    )(h1, s1, sq1, params["g1"], params["be1"], params["w1"],
      s2, sq2, params["g2"], params["be2"], params["w2"], params["b2"])

    return out[:, :OUT]


# --------------------------------------------------------------------------
# Parameters (torch.nn.Linear-style init), stored transposed (in, out),
# zero-padded to lane-friendly shapes, weights in bf16.
# --------------------------------------------------------------------------
def init_params(key):
    ks = jax.random.split(key, 6)

    def linear(kw, kb, fi, fo, fip, fop):
        bound = 1.0 / jnp.sqrt(jnp.float32(fi))
        w = jax.random.uniform(kw, (fi, fo), jnp.float32, -bound, bound)
        b = jax.random.uniform(kb, (1, fo), jnp.float32, -bound, bound)
        wp = jnp.zeros((fip, fop), jnp.float32).at[:fi, :fo].set(w)
        bp = jnp.zeros((1, fop), jnp.float32).at[:, :fo].set(b)
        return wp, bp

    w0, _b0 = linear(ks[0], ks[1], INPUT_SIZE, H1, INPUT_SIZE, H1P)
    w1, _b1 = linear(ks[2], ks[3], H1, H2, H1P, H2P)
    w2, b2 = linear(ks[4], ks[5], H2, OUT, H2P, OUT8)

    # b0/b1 are created for init parity but intentionally not used: training-
    # mode BatchNorm's mean subtraction cancels them exactly.
    pad = lambda v, s: jnp.zeros((1, s), jnp.float32).at[:, :v.shape[1]].set(v)
    return dict(
        w0=w0.astype(jnp.bfloat16),
        w1=w1.astype(jnp.bfloat16),
        w2=w2.astype(jnp.bfloat16),
        b2=b2,
        g1=pad(jnp.ones((1, H1), jnp.float32), H1P),
        be1=pad(jnp.zeros((1, H1), jnp.float32), H1P),
        g2=pad(jnp.ones((1, H2), jnp.float32), H2P),
        be2=pad(jnp.zeros((1, H2), jnp.float32), H2P),
    )


# --------------------------------------------------------------------------
# Pure-JAX reference mirroring the kernel's bf16 casts (for a sanity check).
# --------------------------------------------------------------------------
def reference_forward(x, params):
    f32 = jnp.float32
    xb = x.reshape(-1, INPUT_SIZE).astype(jnp.bfloat16).astype(f32)

    def bn_relu(h, gamma, beta):
        mean = h.mean(axis=0)
        var = h.var(axis=0)                       # biased, training mode
        out = (h - mean) * lax.rsqrt(var + BN_EPS) * gamma + beta
        return jnp.maximum(out, 0.0)

    h1 = xb @ params["w0"].astype(f32)
    a1 = bn_relu(h1, params["g1"], params["be1"]).astype(jnp.bfloat16).astype(f32)
    h2 = a1 @ params["w1"].astype(f32)
    a2 = bn_relu(h2, params["g2"], params["be2"]).astype(jnp.bfloat16).astype(f32)
    out = a2 @ params["w2"].astype(f32) + params["b2"]
    return out[:, :OUT]


if __name__ == "__main__":
    key = jax.random.PRNGKey(0)
    k_params, k_x = jax.random.split(key)

    params = init_params(k_params)
    batch = 8
    x = jax.random.normal(k_x, (batch, INPUT_SIZE), jnp.float32)

    out = jax.block_until_ready(model_forward(x, params))
    assert out.shape == (batch, OUT), out.shape

    ref = jax.block_until_ready(reference_forward(x, params))
    assert jnp.allclose(out, ref, atol=5e-2, rtol=5e-2), (
        float(jnp.max(jnp.abs(out - ref))))

    print("KERNEL_OK")
</pallas_src>

<mosaic_0001>
module attributes {stable_mosaic.version = 11 : i64} {
  func.func @_k2_bn1_fc1_stats(%arg0: i32, %arg1: memref<8x128xbf16, #tpu.memory_space<vmem>>, %arg2: memref<1x128xf32, #tpu.memory_space<vmem>>, %arg3: memref<1x128xf32, #tpu.memory_space<vmem>>, %arg4: memref<1x128xf32, #tpu.memory_space<vmem>>, %arg5: memref<1x128xf32, #tpu.memory_space<vmem>>, %arg6: memref<128x128xbf16, #tpu.memory_space<vmem>>, %arg7: memref<1x128xf32, #tpu.memory_space<vmem>>, %arg8: memref<1x128xf32, #tpu.memory_space<vmem>>) attributes {dimension_semantics = [#tpu.dimension_semantics<arbitrary>], iteration_bounds = array<i64: 1>, scalar_prefetch = 0 : i64, scratch_operands = 0 : i64, tpu.core_type = #tpu.core_type<tc>, window_params = [{transform_indices = @transform_0, window_bounds = array<i64: 8, 128>}, {pipeline_mode = #tpu.pipeline_mode<synchronous>, transform_indices = @transform_1, window_bounds = array<i64: 1, 128>}, {pipeline_mode = #tpu.pipeline_mode<synchronous>, transform_indices = @transform_2, window_bounds = array<i64: 1, 128>}, {pipeline_mode = #tpu.pipeline_mode<synchronous>, transform_indices = @transform_3, window_bounds = array<i64: 1, 128>}, {pipeline_mode = #tpu.pipeline_mode<synchronous>, transform_indices = @transform_4, window_bounds = array<i64: 1, 128>}, {pipeline_mode = #tpu.pipeline_mode<synchronous>, transform_indices = @transform_5, window_bounds = array<i64: 128, 128>}, {pipeline_mode = #tpu.pipeline_mode<synchronous>, transform_indices = @transform_6, window_bounds = array<i64: 1, 128>}, {pipeline_mode = #tpu.pipeline_mode<synchronous>, transform_indices = @transform_7, window_bounds = array<i64: 1, 128>}]} {
    %c0_i32 = arith.constant 0 : i32
    %0 = arith.cmpi eq, %arg0, %c0_i32 : i32
    %1 = arith.extui %0 : i1 to i32
    %c0_i32_0 = arith.constant 0 : i32
    %2 = arith.cmpi ne, %1, %c0_i32_0 : i32
    scf.if %2 {
      %cst_27 = arith.constant 0.000000e+00 : f32
      %43 = vector.broadcast %cst_27 : f32 to vector<1x128xf32>
      %c0_28 = arith.constant 0 : index
      %c0_29 = arith.constant 0 : index
      %44 = vector.load %arg7[%c0_28, %c0_29] : memref<1x128xf32, #tpu.memory_space<vmem>>, vector<1x128xf32>
      tpu.vector_store %arg7[%c0_28, %c0_29], %43 {strides = array<i32>} : memref<1x128xf32, #tpu.memory_space<vmem>>, vector<1x128xf32>,
      %cst_30 = arith.constant 0.000000e+00 : f32
      %45 = vector.broadcast %cst_30 : f32 to vector<1x128xf32>
      %c0_31 = arith.constant 0 : index
      %c0_32 = arith.constant 0 : index
      %46 = vector.load %arg8[%c0_31, %c0_32] : memref<1x128xf32, #tpu.memory_space<vmem>>, vector<1x128xf32>
      tpu.vector_store %arg8[%c0_31, %c0_32], %45 {strides = array<i32>} : memref<1x128xf32, #tpu.memory_space<vmem>>, vector<1x128xf32>,
    } else {
    }
    %c0 = arith.constant 0 : index
    %c0_1 = arith.constant 0 : index
    %3 = vector.load %arg2[%c0, %c0_1] : memref<1x128xf32, #tpu.memory_space<vmem>>, vector<1x128xf32>
    %c0_2 = arith.constant 0 : index
    %c0_3 = arith.constant 0 : index
    %4 = vector.load %arg3[%c0_2, %c0_3] : memref<1x128xf32, #tpu.memory_space<vmem>>, vector<1x128xf32>
    %c0_4 = arith.constant 0 : index
    %c0_5 = arith.constant 0 : index
    %5 = vector.load %arg4[%c0_4, %c0_5] : memref<1x128xf32, #tpu.memory_space<vmem>>, vector<1x128xf32>
    %c0_6 = arith.constant 0 : index
    %c0_7 = arith.constant 0 : index
    %6 = vector.load %arg5[%c0_6, %c0_7] : memref<1x128xf32, #tpu.memory_space<vmem>>, vector<1x128xf32>
    %cst = arith.constant 1.250000e-01 : f32
    %7 = vector.broadcast %cst : f32 to vector<1x128xf32>
    %8 = arith.mulf %3, %7 : vector<1x128xf32>
    %cst_8 = arith.constant 1.250000e-01 : f32
    %9 = vector.broadcast %cst_8 : f32 to vector<1x128xf32>
    %10 = arith.mulf %4, %9 : vector<1x128xf32>
    %11 = arith.mulf %8, %8 : vector<1x128xf32>
    %12 = arith.subf %10, %11 : vector<1x128xf32>
    %cst_9 = arith.constant 0.000000e+00 : f32
    %13 = vector.broadcast %cst_9 : f32 to vector<1x128xf32>
    %14 = arith.maximumf %12, %13 : vector<1x128xf32>
    %cst_10 = arith.constant 9.99999974E-6 : f32
    %15 = vector.broadcast %cst_10 : f32 to vector<1x128xf32>
    %16 = arith.addf %14, %15 : vector<1x128xf32>
    %17 = math.rsqrt %16 : vector<1x128xf32>
    %18 = arith.mulf %5, %17 : vector<1x128xf32>
    %19 = arith.mulf %8, %18 : vector<1x128xf32>
    %20 = arith.subf %6, %19 : vector<1x128xf32>
    %c0_11 = arith.constant 0 : index
    %c0_12 = arith.constant 0 : index
    %21 = vector.load %arg1[%c0_11, %c0_12] : memref<8x128xbf16, #tpu.memory_space<vmem>>, vector<8x128xbf16>
    %22 = arith.extf %21 : vector<8x128xbf16> to vector<8x128xf32>
    %23 = vector.broadcast %18 : vector<1x128xf32> to vector<8x128xf32>
    %24 = arith.mulf %22, %23 : vector<8x128xf32>
    %25 = vector.broadcast %20 : vector<1x128xf32> to vector<8x128xf32>
    %26 = arith.addf %24, %25 : vector<8x128xf32>
    %cst_13 = arith.constant 0.000000e+00 : f32
    %27 = vector.broadcast %cst_13 : f32 to vector<8x128xf32>
    %28 = arith.maximumf %26, %27 : vector<8x128xf32>
    %29 = arith.truncf %28 : vector<8x128xf32> to vector<8x128xbf16>
    %c0_14 = arith.constant 0 : index
    %c0_15 = arith.constant 0 : index
    %30 = vector.load %arg6[%c0_14, %c0_15] : memref<128x128xbf16, #tpu.memory_space<vmem>>, vector<128x128xbf16>
    %cst_16 = arith.constant dense<0.000000e+00> : vector<8x128xf32>
    %31 = tpu.matmul %29, %30, %cst_16 {dimension_numbers = #tpu.dot_dimension_numbers<[1], [0], [0], [1], [0, 0, 1, 1], [], []>} : vector<8x128xbf16>, vector<128x128xbf16>, vector<8x128xf32> -> vector<8x128xf32>
    %c0_17 = arith.constant 0 : index
    %c0_18 = arith.constant 0 : index
    %32 = vector.load %arg7[%c0_17, %c0_18] : memref<1x128xf32, #tpu.memory_space<vmem>>, vector<1x128xf32>
    %cst_19 = arith.constant dense<0.000000e+00> : vector<128xf32>
    %33 = vector.multi_reduction <add>, %31, %cst_19 [0] : vector<8x128xf32> to vector<128xf32>
    %34 = vector.shape_cast %33 : vector<128xf32> to vector<1x128xf32>
    %35 = arith.addf %32, %34 : vector<1x128xf32>
    %c0_20 = arith.constant 0 : index
    %c0_21 = arith.constant 0 : index
    %36 = vector.load %arg7[%c0_20, %c0_21] : memref<1x128xf32, #tpu.memory_space<vmem>>, vector<1x128xf32>
    tpu.vector_store %arg7[%c0_20, %c0_21], %35 {strides = array<i32>} : memref<1x128xf32, #tpu.memory_space<vmem>>, vector<1x128xf32>,
    %c0_22 = arith.constant 0 : index
    %c0_23 = arith.constant 0 : index
    %37 = vector.load %arg8[%c0_22, %c0_23] : memref<1x128xf32, #tpu.memory_space<vmem>>, vector<1x128xf32>
    %38 = arith.mulf %31, %31 : vector<8x128xf32>
    %cst_24 = arith.constant dense<0.000000e+00> : vector<128xf32>
    %39 = vector.multi_reduction <add>, %38, %cst_24 [0] : vector<8x128xf32> to vector<128xf32>
    %40 = vector.shape_cast %39 : vector<128xf32> to vector<1x128xf32>
    %41 = arith.addf %37, %40 : vector<1x128xf32>
    %c0_25 = arith.constant 0 : index
    %c0_26 = arith.constant 0 : index
    %42 = vector.load %arg8[%c0_25, %c0_26] : memref<1x128xf32, #tpu.memory_space<vmem>>, vector<1x128xf32>
    tpu.vector_store %arg8[%c0_25, %c0_26], %41 {strides = array<i32>} : memref<1x128xf32, #tpu.memory_space<vmem>>, vector<1x128xf32>,
    return
  }
  func.func @transform_0(%arg0: i32) -> (i32, i32) {
    %c0_i32 = arith.constant 0 : i32
    %c0_i32_0 = arith.constant 0 : i32
    return %arg0, %c0_i32 : i32, i32
  }
  func.func @transform_1(%arg0: i32) -> (i32, i32) {
    %c0_i32 = arith.constant 0 : i32
    %c0_i32_0 = arith.constant 0 : i32
    %c0_i32_1 = arith.constant 0 : i32
    return %c0_i32, %c0_i32_0 : i32, i32
  }
  func.func @transform_2(%arg0: i32) -> (i32, i32) {
    %c0_i32 = arith.constant 0 : i32
    %c0_i32_0 = arith.constant 0 : i32
    %c0_i32_1 = arith.constant 0 : i32
    return %c0_i32, %c0_i32_0 : i32, i32
  }
  func.func @transform_3(%arg0: i32) -> (i32, i32) {
    %c0_i32 = arith.constant 0 : i32
    %c0_i32_0 = arith.constant 0 : i32
    %c0_i32_1 = arith.constant 0 : i32
    return %c0_i32, %c0_i32_0 : i32, i32
  }
  func.func @transform_4(%arg0: i32) -> (i32, i32) {
    %c0_i32 = arith.constant 0 : i32
    %c0_i32_0 = arith.constant 0 : i32
    %c0_i32_1 = arith.constant 0 : i32
    return %c0_i32, %c0_i32_0 : i32, i32
  }
  func.func @transform_5(%arg0: i32) -> (i32, i32) {
    %c0_i32 = arith.constant 0 : i32
    %c0_i32_0 = arith.constant 0 : i32
    %c0_i32_1 = arith.constant 0 : i32
    return %c0_i32, %c0_i32_0 : i32, i32
  }
  func.func @transform_6(%arg0: i32) -> (i32, i32) {
    %c0_i32 = arith.constant 0 : i32
    %c0_i32_0 = arith.constant 0 : i32
    %c0_i32_1 = arith.constant 0 : i32
    return %c0_i32, %c0_i32_0 : i32, i32
  }
  func.func @transform_7(%arg0: i32) -> (i32, i32) {
    %c0_i32 = arith.constant 0 : i32
    %c0_i32_0 = arith.constant 0 : i32
    %c0_i32_1 = arith.constant 0 : i32
    return %c0_i32, %c0_i32_0 : i32, i32
  }
}

module attributes {stable_mosaic.version = 11 : i64} {
  func.func @_k1_fc0_stats(%arg0: i32, %arg1: memref<8x957xf32, #tpu.memory_space<vmem>>, %arg2: memref<957x128xbf16, #tpu.memory_space<vmem>>, %arg3: memref<8x128xbf16, #tpu.memory_space<vmem>>, %arg4: memref<1x128xf32, #tpu.memory_space<vmem>>, %arg5: memref<1x128xf32, #tpu.memory_space<vmem>>) attributes {dimension_semantics = [#tpu.dimension_semantics<arbitrary>], iteration_bounds = array<i64: 1>, scalar_prefetch = 0 : i64, scratch_operands = 0 : i64, tpu.core_type = #tpu.core_type<tc>, window_params = [{transform_indices = @transform_0, window_bounds = array<i64: 8, 957>}, {pipeline_mode = #tpu.pipeline_mode<synchronous>, transform_indices = @transform_1, window_bounds = array<i64: 957, 128>}, {transform_indices = @transform_2, window_bounds = array<i64: 8, 128>}, {pipeline_mode = #tpu.pipeline_mode<synchronous>, transform_indices = @transform_3, window_bounds = array<i64: 1, 128>}, {pipeline_mode = #tpu.pipeline_mode<synchronous>, transform_indices = @transform_4, window_bounds = array<i64: 1, 128>}]} {
    %c0 = arith.constant 0 : index
    %c0_0 = arith.constant 0 : index
    %0 = vector.load %arg1[%c0, %c0_0] : memref<8x957xf32, #tpu.memory_space<vmem>>, vector<8x957xf32>
    %1 = arith.truncf %0 : vector<8x957xf32> to vector<8x957xbf16>
    %c0_1 = arith.constant 0 : index
    %c0_2 = arith.constant 0 : index
    %2 = vector.load %arg2[%c0_1, %c0_2] : memref<957x128xbf16, #tpu.memory_space<vmem>>, vector<957x128xbf16>
    %cst = arith.constant dense<0.000000e+00> : vector<8x128xf32>
    %3 = tpu.matmul %1, %2, %cst {dimension_numbers = #tpu.dot_dimension_numbers<[1], [0], [0], [1], [0, 0, 1, 1], [], []>} : vector<8x957xbf16>, vector<957x128xbf16>, vector<8x128xf32> -> vector<8x128xf32>
    %4 = arith.truncf %3 : vector<8x128xf32> to vector<8x128xbf16>
    %c0_3 = arith.constant 0 : index
    %c0_4 = arith.constant 0 : index
    %5 = vector.load %arg3[%c0_3, %c0_4] : memref<8x128xbf16, #tpu.memory_space<vmem>>, vector<8x128xbf16>
    tpu.vector_store %arg3[%c0_3, %c0_4], %4 {strides = array<i32>} : memref<8x128xbf16, #tpu.memory_space<vmem>>, vector<8x128xbf16>,
    %c0_i32 = arith.constant 0 : i32
    %6 = arith.cmpi eq, %arg0, %c0_i32 : i32
    %7 = arith.extui %6 : i1 to i32
    %c0_i32_5 = arith.constant 0 : i32
    %8 = arith.cmpi ne, %7, %c0_i32_5 : i32
    scf.if %8 {
      %cst_16 = arith.constant 0.000000e+00 : f32
      %20 = vector.broadcast %cst_16 : f32 to vector<1x128xf32>
      %c0_17 = arith.constant 0 : index
      %c0_18 = arith.constant 0 : index
      %21 = vector.load %arg4[%c0_17, %c0_18] : memref<1x128xf32, #tpu.memory_space<vmem>>, vector<1x128xf32>
      tpu.vector_store %arg4[%c0_17, %c0_18], %20 {strides = array<i32>} : memref<1x128xf32, #tpu.memory_space<vmem>>, vector<1x128xf32>,
      %cst_19 = arith.constant 0.000000e+00 : f32
      %22 = vector.broadcast %cst_19 : f32 to vector<1x128xf32>
      %c0_20 = arith.constant 0 : index
      %c0_21 = arith.constant 0 : index
      %23 = vector.load %arg5[%c0_20, %c0_21] : memref<1x128xf32, #tpu.memory_space<vmem>>, vector<1x128xf32>
      tpu.vector_store %arg5[%c0_20, %c0_21], %22 {strides = array<i32>} : memref<1x128xf32, #tpu.memory_space<vmem>>, vector<1x128xf32>,
    } else {
    }
    %c0_6 = arith.constant 0 : index
    %c0_7 = arith.constant 0 : index
    %9 = vector.load %arg4[%c0_6, %c0_7] : memref<1x128xf32, #tpu.memory_space<vmem>>, vector<1x128xf32>
    %cst_8 = arith.constant dense<0.000000e+00> : vector<128xf32>
    %10 = vector.multi_reduction <add>, %3, %cst_8 [0] : vector<8x128xf32> to vector<128xf32>
    %11 = vector.shape_cast %10 : vector<128xf32> to vector<1x128xf32>
    %12 = arith.addf %9, %11 : vector<1x128xf32>
    %c0_9 = arith.constant 0 : index
    %c0_10 = arith.constant 0 : index
    %13 = vector.load %arg4[%c0_9, %c0_10] : memref<1x128xf32, #tpu.memory_space<vmem>>, vector<1x128xf32>
    tpu.vector_store %arg4[%c0_9, %c0_10], %12 {strides = array<i32>} : memref<1x128xf32, #tpu.memory_space<vmem>>, vector<1x128xf32>,
    %c0_11 = arith.constant 0 : index
    %c0_12 = arith.constant 0 : index
    %14 = vector.load %arg5[%c0_11, %c0_12] : memref<1x128xf32, #tpu.memory_space<vmem>>, vector<1x128xf32>
    %15 = arith.mulf %3, %3 : vector<8x128xf32>
    %cst_13 = arith.constant dense<0.000000e+00> : vector<128xf32>
    %16 = vector.multi_reduction <add>, %15, %cst_13 [0] : vector<8x128xf32> to vector<128xf32>
    %17 = vector.shape_cast %16 : vector<128xf32> to vector<1x128xf32>
    %18 = arith.addf %14, %17 : vector<1x128xf32>
    %c0_14 = arith.constant 0 : index
    %c0_15 = arith.constant 0 : index
    %19 = vector.load %arg5[%c0_14, %c0_15] : memref<1x128xf32, #tpu.memory_space<vmem>>, vector<1x128xf32>
    tpu.vector_store %arg5[%c0_14, %c0_15], %18 {strides = array<i32>} : memref<1x128xf32, #tpu.memory_space<vmem>>, vector<1x128xf32>,
    return
  }
  func.func @transform_0(%arg0: i32) -> (i32, i32) {
    %c0_i32 = arith.constant 0 : i32
    %c0_i32_0 = arith.constant 0 : i32
    return %arg0, %c0_i32 : i32, i32
  }
  func.func @transform_1(%arg0: i32) -> (i32, i32) {
    %c0_i32 = arith.constant 0 : i32
    %c0_i32_0 = arith.constant 0 : i32
    %c0_i32_1 = arith.constant 0 : i32
    return %c0_i32, %c0_i32_0 : i32, i32
  }
  func.func @transform_2(%arg0: i32) -> (i32, i32) {
    %c0_i32 = arith.constant 0 : i32
    %c0_i32_0 = arith.constant 0 : i32
    return %arg0, %c0_i32 : i32, i32
  }
  func.func @transform_3(%arg0: i32) -> (i32, i32) {
    %c0_i32 = arith.constant 0 : i32
    %c0_i32_0 = arith.constant 0 : i32
    %c0_i32_1 = arith.constant 0 : i32
    return %c0_i32, %c0_i32_0 : i32, i32
  }
  func.func @transform_4(%arg0: i32) -> (i32, i32) {
    %c0_i32 = arith.constant 0 : i32
    %c0_i32_0 = arith.constant 0 : i32
    %c0_i32_1 = arith.constant 0 : i32
    return %c0_i32, %c0_i32_0 : i32, i32
  }
}

module attributes {stable_mosaic.version = 11 : i64} {
  func.func @_k3_bn_fc(%arg0: i32, %arg1: memref<8x128xbf16, #tpu.memory_space<vmem>>, %arg2: memref<1x128xf32, #tpu.memory_space<vmem>>, %arg3: memref<1x128xf32, #tpu.memory_space<vmem>>, %arg4: memref<1x128xf32, #tpu.memory_space<vmem>>, %arg5: memref<1x128xf32, #tpu.memory_space<vmem>>, %arg6: memref<128x128xbf16, #tpu.memory_space<vmem>>, %arg7: memref<1x128xf32, #tpu.memory_space<vmem>>, %arg8: memref<1x128xf32, #tpu.memory_space<vmem>>, %arg9: memref<1x128xf32, #tpu.memory_space<vmem>>, %arg10: memref<1x128xf32, #tpu.memory_space<vmem>>, %arg11: memref<128x8xbf16, #tpu.memory_space<vmem>>, %arg12: memref<1x8xf32, #tpu.memory_space<vmem>>, %arg13: memref<8x8xf32, #tpu.memory_space<vmem>>) attributes {dimension_semantics = [#tpu.dimension_semantics<parallel>], iteration_bounds = array<i64: 1>, scalar_prefetch = 0 : i64, scratch_operands = 0 : i64, tpu.core_type = #tpu.core_type<tc>, window_params = [{transform_indices = @transform_0, window_bounds = array<i64: 8, 128>}, {pipeline_mode = #tpu.pipeline_mode<synchronous>, transform_indices = @transform_1, window_bounds = array<i64: 1, 128>}, {pipeline_mode = #tpu.pipeline_mode<synchronous>, transform_indices = @transform_2, window_bounds = array<i64: 1, 128>}, {pipeline_mode = #tpu.pipeline_mode<synchronous>, transform_indices = @transform_3, window_bounds = array<i64: 1, 128>}, {pipeline_mode = #tpu.pipeline_mode<synchronous>, transform_indices = @transform_4, window_bounds = array<i64: 1, 128>}, {pipeline_mode = #tpu.pipeline_mode<synchronous>, transform_indices = @transform_5, window_bounds = array<i64: 128, 128>}, {pipeline_mode = #tpu.pipeline_mode<synchronous>, transform_indices = @transform_6, window_bounds = array<i64: 1, 128>}, {pipeline_mode = #tpu.pipeline_mode<synchronous>, transform_indices = @transform_7, window_bounds = array<i64: 1, 128>}, {pipeline_mode = #tpu.pipeline_mode<synchronous>, transform_indices = @transform_8, window_bounds = array<i64: 1, 128>}, {pipeline_mode = #tpu.pipeline_mode<synchronous>, transform_indices = @transform_9, window_bounds = array<i64: 1, 128>}, {pipeline_mode = #tpu.pipeline_mode<synchronous>, transform_indices = @transform_10, window_bounds = array<i64: 128, 8>}, {pipeline_mode = #tpu.pipeline_mode<synchronous>, transform_indices = @transform_11, window_bounds = array<i64: 1, 8>}, {transform_indices = @transform_12, window_bounds = array<i64: 8, 8>}]} {
    %c0 = arith.constant 0 : index
    %c0_0 = arith.constant 0 : index
    %0 = vector.load %arg2[%c0, %c0_0] : memref<1x128xf32, #tpu.memory_space<vmem>>, vector<1x128xf32>
    %c0_1 = arith.constant 0 : index
    %c0_2 = arith.constant 0 : index
    %1 = vector.load %arg3[%c0_1, %c0_2] : memref<1x128xf32, #tpu.memory_space<vmem>>, vector<1x128xf32>
    %c0_3 = arith.constant 0 : index
    %c0_4 = arith.constant 0 : index
    %2 = vector.load %arg4[%c0_3, %c0_4] : memref<1x128xf32, #tpu.memory_space<vmem>>, vector<1x128xf32>
    %c0_5 = arith.constant 0 : index
    %c0_6 = arith.constant 0 : index
    %3 = vector.load %arg5[%c0_5, %c0_6] : memref<1x128xf32, #tpu.memory_space<vmem>>, vector<1x128xf32>
    %cst = arith.constant 1.250000e-01 : f32
    %4 = vector.broadcast %cst : f32 to vector<1x128xf32>
    %5 = arith.mulf %0, %4 : vector<1x128xf32>
    %cst_7 = arith.constant 1.250000e-01 : f32
    %6 = vector.broadcast %cst_7 : f32 to vector<1x128xf32>
    %7 = arith.mulf %1, %6 : vector<1x128xf32>
    %8 = arith.mulf %5, %5 : vector<1x128xf32>
    %9 = arith.subf %7, %8 : vector<1x128xf32>
    %cst_8 = arith.constant 0.000000e+00 : f32
    %10 = vector.broadcast %cst_8 : f32 to vector<1x128xf32>
    %11 = arith.maximumf %9, %10 : vector<1x128xf32>
    %cst_9 = arith.constant 9.99999974E-6 : f32
    %12 = vector.broadcast %cst_9 : f32 to vector<1x128xf32>
    %13 = arith.addf %11, %12 : vector<1x128xf32>
    %14 = math.rsqrt %13 : vector<1x128xf32>
    %15 = arith.mulf %2, %14 : vector<1x128xf32>
    %16 = arith.mulf %5, %15 : vector<1x128xf32>
    %17 = arith.subf %3, %16 : vector<1x128xf32>
    %c0_10 = arith.constant 0 : index
    %c0_11 = arith.constant 0 : index
    %18 = vector.load %arg7[%c0_10, %c0_11] : memref<1x128xf32, #tpu.memory_space<vmem>>, vector<1x128xf32>
    %c0_12 = arith.constant 0 : index
    %c0_13 = arith.constant 0 : index
    %19 = vector.load %arg8[%c0_12, %c0_13] : memref<1x128xf32, #tpu.memory_space<vmem>>, vector<1x128xf32>
    %c0_14 = arith.constant 0 : index
    %c0_15 = arith.constant 0 : index
    %20 = vector.load %arg9[%c0_14, %c0_15] : memref<1x128xf32, #tpu.memory_space<vmem>>, vector<1x128xf32>
    %c0_16 = arith.constant 0 : index
    %c0_17 = arith.constant 0 : index
    %21 = vector.load %arg10[%c0_16, %c0_17] : memref<1x128xf32, #tpu.memory_space<vmem>>, vector<1x128xf32>
    %cst_18 = arith.constant 1.250000e-01 : f32
    %22 = vector.broadcast %cst_18 : f32 to vector<1x128xf32>
    %23 = arith.mulf %18, %22 : vector<1x128xf32>
    %cst_19 = arith.constant 1.250000e-01 : f32
    %24 = vector.broadcast %cst_19 : f32 to vector<1x128xf32>
    %25 = arith.mulf %19, %24 : vector<1x128xf32>
    %26 = arith.mulf %23, %23 : vector<1x128xf32>
    %27 = arith.subf %25, %26 : vector<1x128xf32>
    %cst_20 = arith.constant 0.000000e+00 : f32
    %28 = vector.broadcast %cst_20 : f32 to vector<1x128xf32>
    %29 = arith.maximumf %27, %28 : vector<1x128xf32>
    %cst_21 = arith.constant 9.99999974E-6 : f32
    %30 = vector.broadcast %cst_21 : f32 to vector<1x128xf32>
    %31 = arith.addf %29, %30 : vector<1x128xf32>
    %32 = math.rsqrt %31 : vector<1x128xf32>
    %33 = arith.mulf %20, %32 : vector<1x128xf32>
    %34 = arith.mulf %23, %33 : vector<1x128xf32>
    %35 = arith.subf %21, %34 : vector<1x128xf32>
    %c0_22 = arith.constant 0 : index
    %c0_23 = arith.constant 0 : index
    %36 = vector.load %arg1[%c0_22, %c0_23] : memref<8x128xbf16, #tpu.memory_space<vmem>>, vector<8x128xbf16>
    %37 = arith.extf %36 : vector<8x128xbf16> to vector<8x128xf32>
    %38 = vector.broadcast %15 : vector<1x128xf32> to vector<8x128xf32>
    %39 = arith.mulf %37, %38 : vector<8x128xf32>
    %40 = vector.broadcast %17 : vector<1x128xf32> to vector<8x128xf32>
    %41 = arith.addf %39, %40 : vector<8x128xf32>
    %cst_24 = arith.constant 0.000000e+00 : f32
    %42 = vector.broadcast %cst_24 : f32 to vector<8x128xf32>
    %43 = arith.maximumf %41, %42 : vector<8x128xf32>
    %44 = arith.truncf %43 : vector<8x128xf32> to vector<8x128xbf16>
    %c0_25 = arith.constant 0 : index
    %c0_26 = arith.constant 0 : index
    %45 = vector.load %arg6[%c0_25, %c0_26] : memref<128x128xbf16, #tpu.memory_space<vmem>>, vector<128x128xbf16>
    %cst_27 = arith.constant dense<0.000000e+00> : vector<8x128xf32>
    %46 = tpu.matmul %44, %45, %cst_27 {dimension_numbers = #tpu.dot_dimension_numbers<[1], [0], [0], [1], [0, 0, 1, 1], [], []>} : vector<8x128xbf16>, vector<128x128xbf16>, vector<8x128xf32> -> vector<8x128xf32>
    %47 = vector.broadcast %33 : vector<1x128xf32> to vector<8x128xf32>
    %48 = arith.mulf %46, %47 : vector<8x128xf32>
    %49 = vector.broadcast %35 : vector<1x128xf32> to vector<8x128xf32>
    %50 = arith.addf %48, %49 : vector<8x128xf32>
    %cst_28 = arith.constant 0.000000e+00 : f32
    %51 = vector.broadcast %cst_28 : f32 to vector<8x128xf32>
    %52 = arith.maximumf %50, %51 : vector<8x128xf32>
    %53 = arith.truncf %52 : vector<8x128xf32> to vector<8x128xbf16>
    %c0_29 = arith.constant 0 : index
    %c0_30 = arith.constant 0 : index
    %54 = vector.load %arg11[%c0_29, %c0_30] : memref<128x8xbf16, #tpu.memory_space<vmem>>, vector<128x8xbf16>
    %cst_31 = arith.constant dense<0.000000e+00> : vector<8x8xf32>
    %55 = tpu.matmul %53, %54, %cst_31 {dimension_numbers = #tpu.dot_dimension_numbers<[1], [0], [0], [1], [0, 0, 1, 1], [], []>} : vector<8x128xbf16>, vector<128x8xbf16>, vector<8x8xf32> -> vector<8x8xf32>
    %c0_32 = arith.constant 0 : index
    %c0_33 = arith.constant 0 : index
    %56 = vector.load %arg12[%c0_32, %c0_33] : memref<1x8xf32, #tpu.memory_space<vmem>>, vector<1x8xf32>
    %57 = vector.broadcast %56 : vector<1x8xf32> to vector<8x8xf32>
    %58 = arith.addf %55, %57 : vector<8x8xf32>
    %c0_34 = arith.constant 0 : index
    %c0_35 = arith.constant 0 : index
    %59 = vector.load %arg13[%c0_34, %c0_35] : memref<8x8xf32, #tpu.memory_space<vmem>>, vector<8x8xf32>
    tpu.vector_store %arg13[%c0_34, %c0_35], %58 {strides = array<i32>} : memref<8x8xf32, #tpu.memory_space<vmem>>, vector<8x8xf32>,
    return
  }
  func.func @transform_0(%arg0: i32) -> (i32, i32) {
    %c0_i32 = arith.constant 0 : i32
    %c0_i32_0 = arith.constant 0 : i32
    return %arg0, %c0_i32 : i32, i32
  }
  func.func @transform_1(%arg0: i32) -> (i32, i32) {
    %c0_i32 = arith.constant 0 : i32
    %c0_i32_0 = arith.constant 0 : i32
    %c0_i32_1 = arith.constant 0 : i32
    return %c0_i32, %c0_i32_0 : i32, i32
  }
  func.func @transform_2(%arg0: i32) -> (i32, i32) {
    %c0_i32 = arith.constant 0 : i32
    %c0_i32_0 = arith.constant 0 : i32
    %c0_i32_1 = arith.constant 0 : i32
    return %c0_i32, %c0_i32_0 : i32, i32
  }
  func.func @transform_3(%arg0: i32) -> (i32, i32) {
    %c0_i32 = arith.constant 0 : i32
    %c0_i32_0 = arith.constant 0 : i32
    %c0_i32_1 = arith.constant 0 : i32
    return %c0_i32, %c0_i32_0 : i32, i32
  }
  func.func @transform_4(%arg0: i32) -> (i32, i32) {
    %c0_i32 = arith.constant 0 : i32
    %c0_i32_0 = arith.constant 0 : i32
    %c0_i32_1 = arith.constant 0 : i32
    return %c0_i32, %c0_i32_0 : i32, i32
  }
  func.func @transform_5(%arg0: i32) -> (i32, i32) {
    %c0_i32 = arith.constant 0 : i32
    %c0_i32_0 = arith.constant 0 : i32
    %c0_i32_1 = arith.constant 0 : i32
    return %c0_i32, %c0_i32_0 : i32, i32
  }
  func.func @transform_6(%arg0: i32) -> (i32, i32) {
    %c0_i32 = arith.constant 0 : i32
    %c0_i32_0 = arith.constant 0 : i32
    %c0_i32_1 = arith.constant 0 : i32
    return %c0_i32, %c0_i32_0 : i32, i32
  }
  func.func @transform_7(%arg0: i32) -> (i32, i32) {
    %c0_i32 = arith.constant 0 : i32
    %c0_i32_0 = arith.constant 0 : i32
    %c0_i32_1 = arith.constant 0 : i32
    return %c0_i32, %c0_i32_0 : i32, i32
  }
  func.func @transform_8(%arg0: i32) -> (i32, i32) {
    %c0_i32 = arith.constant 0 : i32
    %c0_i32_0 = arith.constant 0 : i32
    %c0_i32_1 = arith.constant 0 : i32
    return %c0_i32, %c0_i32_0 : i32, i32
  }
  func.func @transform_9(%arg0: i32) -> (i32, i32) {
    %c0_i32 = arith.constant 0 : i32
    %c0_i32_0 = arith.constant 0 : i32
    %c0_i32_1 = arith.constant 0 : i32
    return %c0_i32, %c0_i32_0 : i32, i32
  }
  func.func @transform_10(%arg0: i32) -> (i32, i32) {
    %c0_i32 = arith.constant 0 : i32
    %c0_i32_0 = arith.constant 0 : i32
    %c0_i32_1 = arith.constant 0 : i32
    return %c0_i32, %c0_i32_0 : i32, i32
  }
  func.func @transform_11(%arg0: i32) -> (i32, i32) {
    %c0_i32 = arith.constant 0 : i32
    %c0_i32_0 = arith.constant 0 : i32
    %c0_i32_1 = arith.constant 0 : i32
    return %c0_i32, %c0_i32_0 : i32, i32
  }
  func.func @transform_12(%arg0: i32) -> (i32, i32) {
    %c0_i32 = arith.constant 0 : i32
    %c0_i32_0 = arith.constant 0 : i32
    return %arg0, %c0_i32 : i32, i32
  }
}

</mosaic_0001>

<llo_original>
// kernel: model_forward.4
$region0: #{model_forward.4}
  #allocation0 [shape = 'u32[]', space=smem, size = 0x4, offset = 0x4, fixed_abs, tag = 'smem constant byte address 0x4 - core index']
  #allocation1 [shape = 'u32[144,128]{1,0:T(1,128)}', space=vmem, size = 0x12000, scoped, tag = 'internal scratch']
  %s0 = inlined_call_operand.vmem [shape: bf16[8,128], index: 0, kind: input, shape index: {}]
  %s1 = inlined_call_operand.vmem [shape: f32[1,128], index: 1, kind: input, shape index: {}]
  %s2 = inlined_call_operand.vmem [shape: f32[1,128], index: 2, kind: input, shape index: {}]
  %s3 = inlined_call_operand.vmem [shape: f32[1,128], index: 3, kind: input, shape index: {}]
  %s4 = inlined_call_operand.vmem [shape: f32[1,128], index: 4, kind: input, shape index: {}]
  %s5 = inlined_call_operand.vmem [shape: bf16[128,128], index: 5, kind: input, shape index: {}]
  %s6 = inlined_call_operand.vmem [shape: f32[1,128], index: 6, kind: output, shape index: {0}]
  %s7 = inlined_call_operand.vmem [shape: f32[1,128], index: 7, kind: output, shape index: {1}]
  %8 = xla_tuple %s6, %s7
  %s9 = sld [smem:[#allocation0]]
  $region46: #{model_forward.4} parent=0
    _
  %s11 = ssub.s32 1, %s9
  %s12 = scalar_select 0, %s11, %s9
  // Predicated region
  $region2: #{model_forward.4} parent=0 // pred_check
    _
  $region3: #{model_forward.4} parent=0 // pred_check_branch
    %14 = sbr.rel (0) target = $region5
  $region4: #{model_forward.4} parent=0 // pred_region
    _
  $region5: #{model_forward.4} parent=0 // pred_fallthru
    _
  // Predicated region
  $region6: #{model_forward.4} parent=0 // pred_check
    _
  $region7: #{model_forward.4} parent=0 // pred_check_branch
    %16 = sbr.rel (0) target = $region9
  $region8: #{model_forward.4} parent=0 // pred_region
    _
  $region9: #{model_forward.4} parent=0 // pred_fallthru
    _
  // Predicated region
  $region10: #{model_forward.4} parent=0 // pred_check
    _
  $region11: #{model_forward.4} parent=0 // pred_check_branch
    %18 = sbr.rel (0) target = $region13
  $region12: #{model_forward.4} parent=0 // pred_region
    _
  $region13: #{model_forward.4} parent=0 // pred_fallthru
    _
  // Predicated region
  $region14: #{model_forward.4} parent=0 // pred_check
    _
  $region15: #{model_forward.4} parent=0 // pred_check_branch
    %20 = sbr.rel (0) target = $region17
  $region16: #{model_forward.4} parent=0 // pred_region
    _
  $region17: #{model_forward.4} parent=0 // pred_fallthru
    _
  // Predicated region
  $region18: #{model_forward.4} parent=0 // pred_check
    _
  $region19: #{model_forward.4} parent=0 // pred_check_branch
    %22 = sbr.rel (0) target = $region21
  $region20: #{model_forward.4} parent=0 // pred_region
    _
  $region21: #{model_forward.4} parent=0 // pred_fallthru
    _
  // Predicated region
  $region22: #{model_forward.4} parent=0 // pred_check
    _
  $region23: #{model_forward.4} parent=0 // pred_check_branch
    %24 = sbr.rel (0) target = $region25
  $region24: #{model_forward.4} parent=0 // pred_region
    _
  $region25: #{model_forward.4} parent=0 // pred_fallthru
    _
  %p26 = scmp.eq.s32.totalorder 0, 0
  // Predicated region
  $region26: #{model_forward.4} parent=0 // pred_check
    %p27 = pneg %p26
  $region27: #{model_forward.4} parent=0 // pred_check_branch
    %29 = sbr.rel (%p27) target = $region29
  $region28: #{model_forward.4} parent=0 // pred_region
    %30 = vst [vmem:[%s6] sm:$0x1] 0.0
    %31 = vst [vmem:[%s7] sm:$0x1] 0.0
  $region29: #{model_forward.4} parent=0 // pred_fallthru
    _
  %v32 = vld [vmem:[%s1] sm:$0x1]
  %v33 = vld [vmem:[%s2] sm:$0x1]
  %v34 = vld [vmem:[%s3] sm:$0x1]
  %v35 = vld [vmem:[%s4] sm:$0x1]
  %v36 = vmul.f32 %v32, 0.125
  %v37 = vmul.f32 %v33, 0.125
  %v38 = vmul.f32 %v36, %v36
  %v39 = vsub.f32 %v37, %v38
  %v40 = vmax.f32 %v39, 0.0
  %v41 = vadd.f32 %v40, 1e-05
  %v42 = vrsqrt.pop %v41
  %v43 = vmul.f32 %v34, %v42
  %v44 = vmul.f32 %v36, %v43
  %v45 = vsub.f32 %v35, %v44
  %v46 = vld [vmem:[%s0] sm:$0xf]
  %v47 = vunpack.c.l.bf16 %v46
  %v49 = vlaneseq
  %v50 = vshrl.u32 %v49, 7
  %v51 = vsub.s32 0, %v50
  %v52 = vrot.slane %v43, %v51
  %v54 = vmul.f32 %v47, %v52
  %v56 = vlaneseq
  %v57 = vshrl.u32 %v56, 7
  %v58 = vsub.s32 0, %v57
  %v59 = vrot.slane %v45, %v58
  %v61 = vadd.f32 %v54, %v59
  %v62 = vmax.f32 %v61, 0.0
  %v63 = vpack.c.bf16 %v62, %v62
  %v64 = vld [vmem:[%s5] sm:$0xf]
  %v65 = vld [vmem:[%s5 + $0x4] sm:$0xf]
  %v66 = vld [vmem:[%s5 + $0x8] sm:$0xf]
  %v67 = vld [vmem:[%s5 + $0xc] sm:$0xf]
  %v68 = vld [vmem:[%s5 + $0x10] sm:$0xf]
  %v69 = vld [vmem:[%s5 + $0x14] sm:$0xf]
  %v70 = vld [vmem:[%s5 + $0x18] sm:$0xf]
  %v71 = vld [vmem:[%s5 + $0x1c] sm:$0xf]
  %v72 = vld [vmem:[%s5 + $0x20] sm:$0xf]
  %v73 = vld [vmem:[%s5 + $0x24] sm:$0xf]
  %v74 = vld [vmem:[%s5 + $0x28] sm:$0xf]
  %v75 = vld [vmem:[%s5 + $0x2c] sm:$0xf]
  %v76 = vld [vmem:[%s5 + $0x30] sm:$0xf]
  %v77 = vld [vmem:[%s5 + $0x34] sm:$0xf]
  %v78 = vld [vmem:[%s5 + $0x38] sm:$0xf]
  %v79 = vld [vmem:[%s5 + $0x3c] sm:$0xf]
  %v96 = vunpack.c.l.b16 %v64
  %v97 = vunpack.c.l.b16 %v65
  %v98 = vunpack.c.l.b16 %v66
  %v99 = vunpack.c.l.b16 %v67
  %v100 = vunpack.c.l.b16 %v68
  %v101 = vunpack.c.l.b16 %v69
  %v102 = vunpack.c.l.b16 %v70
  %v103 = vunpack.c.l.b16 %v71
  %v104 = vunpack.c.l.b16 %v72
  %v105 = vunpack.c.l.b16 %v73
  %v106 = vunpack.c.l.b16 %v74
  %v107 = vunpack.c.l.b16 %v75
  %v108 = vunpack.c.l.b16 %v76
  %v109 = vunpack.c.l.b16 %v77
  %v110 = vunpack.c.l.b16 %v78
  %v111 = vunpack.c.l.b16 %v79
  %v112 = vpack.c.b16 %v97, %v96
  %v113 = vpack.c.b16 %v99, %v98
  %v114 = vpack.c.b16 %v101, %v100
  %v115 = vpack.c.b16 %v103, %v102
  %v116 = vpack.c.b16 %v105, %v104
  %v117 = vpack.c.b16 %v107, %v106
  %v118 = vpack.c.b16 %v109, %v108
  %v119 = vpack.c.b16 %v111, %v110
  %128 = vmatprep.subr.bf16.mxu0 0
  %129 = vmatpush1.bf16.msra.mxu0 %v112
  %130 = vmatprep.subr.bf16.mxu0 0
  %131 = vmatpush1.bf16.msra.mxu0 %v113
  %132 = vmatprep.subr.bf16.mxu0 0
  %133 = vmatpush1.bf16.msra.mxu0 %v114
  %134 = vmatprep.subr.bf16.mxu0 0
  %135 = vmatpush1.bf16.msra.mxu0 %v115
  %136 = vmatprep.subr.bf16.mxu0 0
  %137 = vmatpush1.bf16.msra.mxu0 %v116
  %138 = vmatprep.subr.bf16.mxu0 0
  %139 = vmatpush1.bf16.msra.mxu0 %v117
  %140 = vmatprep.subr.bf16.mxu0 0
  %141 = vmatpush1.bf16.msra.mxu0 %v118
  %142 = vmatprep.subr.bf16.mxu0 0
  %143 = vmatpush1.bf16.msra.mxu0 %v119
  %144 = vmatprep.subr.bf16.mxu0 0
  %145 = vmatpush1.bf16.msra.mxu0 0
  %146 = vmatprep.subr.bf16.mxu0 0
  %147 = vmatpush1.bf16.msra.mxu0 0
  %148 = vmatprep.subr.bf16.mxu0 0
  %149 = vmatpush1.bf16.msra.mxu0 0
  %150 = vmatprep.subr.bf16.mxu0 0
  %151 = vmatpush1.bf16.msra.mxu0 0
  %152 = vmatprep.subr.bf16.mxu0 0
  %153 = vmatpush1.bf16.msra.mxu0 0
  %154 = vmatprep.subr.bf16.mxu0 0
  %155 = vmatpush1.bf16.msra.mxu0 0
  %156 = vmatprep.subr.bf16.mxu0 0
  %157 = vmatpush1.bf16.msra.mxu0 0
  %158 = vmatprep.subr.bf16.mxu0 0
  %159 = vmatpush1.bf16.msra.mxu0 0
  %160 = vmatprep.mubr.bf16.mxu0 0
  %161 = vmatmul.mubr.bf16.gmra.mrb[0].mxu0 %v63
  %v162 = vpop.f32.mrb[0].mxu0
  %v163 = vadd.f32 0.0, %v162
  %v164 = vpop.f32.mrb[0].mxu0
  %v165 = vpop.f32.mrb[0].mxu0
  %v166 = vpop.f32.mrb[0].mxu0
  %167 = vdwg.mxu0
  %v168 = vld [vmem:[%s6] sm:$0x1]
  %v169 = vrot.slane %v163, 4
  %v170 = vadd.f32 %v163, %v169
  %v171 = vrot.slane %v170, 2
  %v172 = vadd.f32 %v170, %v171
  %v173 = vrot.slane %v172, 1
  %v174 = vadd.f32 %v172, %v173
  %v175 = vadd.f32 %v168, %v174
  %176 = vst [vmem:[%s6] sm:$0x1] %v175
  %v177 = vld [vmem:[%s7] sm:$0x1]
  %v178 = vmul.f32 %v163, %v163
  %v179 = vrot.slane %v178, 4
  %v180 = vadd.f32 %v178, %v179
  %v181 = vrot.slane %v180, 2
  %v182 = vadd.f32 %v180, %v181
  %v183 = vrot.slane %v182, 1
  %v184 = vadd.f32 %v182, %v183
  %v185 = vadd.f32 %v177, %v184
  %186 = vst [vmem:[%s7] sm:$0x1] %v185
  // Predicated region
  $region30: #{model_forward.4} parent=0 // pred_check
    _
  $region31: #{model_forward.4} parent=0 // pred_check_branch
    %188 = sbr.rel (0) target = $region33
  $region32: #{model_forward.4} parent=0 // pred_region
    _
  $region33: #{model_forward.4} parent=0 // pred_fallthru
    _
  // Predicated region
  $region34: #{model_forward.4} parent=0 // pred_check
    _
  $region35: #{model_forward.4} parent=0 // pred_check_branch
    %190 = sbr.rel (0) target = $region37
  $region36: #{model_forward.4} parent=0 // pred_region
    _
  $region37: #{model_forward.4} parent=0 // pred_fallthru
    _
  // Predicated region
  $region38: #{model_forward.4} parent=0 // pred_check
    _
  $region39: #{model_forward.4} parent=0 // pred_check_branch
    %192 = sbr.rel (0) target = $region41
  $region40: #{model_forward.4} parent=0 // pred_region
    _
  $region41: #{model_forward.4} parent=0 // pred_fallthru
    _
  // Predicated region
  $region42: #{model_forward.4} parent=0 // pred_check
    _
  $region43: #{model_forward.4} parent=0 // pred_check_branch
    %194 = sbr.rel (0) target = $region45
  $region44: #{model_forward.4} parent=0 // pred_region
    _
  $region45: #{model_forward.4} parent=0 // pred_fallthru
    _

// kernel: model_forward.5
$region0: #{model_forward.5}
  #allocation0 [shape = 'u32[]', space=smem, size = 0x4, offset = 0x4, fixed_abs, tag = 'smem constant byte address 0x4 - core index']
  #allocation1 [shape = 'u32[144,128]{1,0:T(1,128)}', space=vmem, size = 0x12000, scoped, tag = 'internal scratch']
  %s0 = inlined_call_operand.vmem [shape: bf16[8,128], index: 0, kind: input, shape index: {}]
  %s1 = inlined_call_operand.vmem [shape: f32[1,128], index: 1, kind: input, shape index: {}]
  %s2 = inlined_call_operand.vmem [shape: f32[1,128], index: 2, kind: input, shape index: {}]
  %s3 = inlined_call_operand.vmem [shape: f32[1,128], index: 3, kind: input, shape index: {}]
  %s4 = inlined_call_operand.vmem [shape: f32[1,128], index: 4, kind: input, shape index: {}]
  %s5 = inlined_call_operand.vmem [shape: bf16[128,128], index: 5, kind: input, shape index: {}]
  %s6 = inlined_call_operand.vmem [shape: f32[1,128], index: 6, kind: input, shape index: {}]
  %s7 = inlined_call_operand.vmem [shape: f32[1,128], index: 7, kind: input, shape index: {}]
  %s8 = inlined_call_operand.vmem [shape: f32[1,128], index: 8, kind: input, shape index: {}]
  %s9 = inlined_call_operand.vmem [shape: f32[1,128], index: 9, kind: input, shape index: {}]
  %s10 = inlined_call_operand.vmem [shape: bf16[128,8], index: 10, kind: input, shape index: {}]
  %s11 = inlined_call_operand.vmem [shape: f32[1,8], index: 11, kind: input, shape index: {}]
  %s12 = inlined_call_operand.vmem [shape: f32[8,8], index: 12, kind: output, shape index: {}]
  %s13 = sld [smem:[#allocation0]]
  $region58: #{model_forward.5} parent=0
    _
  %s15 = ssub.s32 1, %s13
  %s16 = scalar_select 0, %s15, %s13
  // Predicated region
  $region2: #{model_forward.5} parent=0 // pred_check
    _
  $region3: #{model_forward.5} parent=0 // pred_check_branch
    %18 = sbr.rel (0) target = $region5
  $region4: #{model_forward.5} parent=0 // pred_region
    _
  $region5: #{model_forward.5} parent=0 // pred_fallthru
    _
  // Predicated region
  $region6: #{model_forward.5} parent=0 // pred_check
    _
  $region7: #{model_forward.5} parent=0 // pred_check_branch
    %20 = sbr.rel (0) target = $region9
  $region8: #{model_forward.5} parent=0 // pred_region
    _
  $region9: #{model_forward.5} parent=0 // pred_fallthru
    _
  // Predicated region
  $region10: #{model_forward.5} parent=0 // pred_check
    _
  $region11: #{model_forward.5} parent=0 // pred_check_branch
    %22 = sbr.rel (0) target = $region13
  $region12: #{model_forward.5} parent=0 // pred_region
    _
  $region13: #{model_forward.5} parent=0 // pred_fallthru
    _
  // Predicated region
  $region14: #{model_forward.5} parent=0 // pred_check
    _
  $region15: #{model_forward.5} parent=0 // pred_check_branch
    %24 = sbr.rel (0) target = $region17
  $region16: #{model_forward.5} parent=0 // pred_region
    _
  $region17: #{model_forward.5} parent=0 // pred_fallthru
    _
  // Predicated region
  $region18: #{model_forward.5} parent=0 // pred_check
    _
  $region19: #{model_forward.5} parent=0 // pred_check_branch
    %26 = sbr.rel (0) target = $region21
  $region20: #{model_forward.5} parent=0 // pred_region
    _
  $region21: #{model_forward.5} parent=0 // pred_fallthru
    _
  // Predicated region
  $region22: #{model_forward.5} parent=0 // pred_check
    _
  $region23: #{model_forward.5} parent=0 // pred_check_branch
    %28 = sbr.rel (0) target = $region25
  $region24: #{model_forward.5} parent=0 // pred_region
    _
  $region25: #{model_forward.5} parent=0 // pred_fallthru
    _
  // Predicated region
  $region26: #{model_forward.5} parent=0 // pred_check
    _
  $region27: #{model_forward.5} parent=0 // pred_check_branch
    %30 = sbr.rel (0) target = $region29
  $region28: #{model_forward.5} parent=0 // pred_region
    _
  $region29: #{model_forward.5} parent=0 // pred_fallthru
    _
  // Predicated region
  $region30: #{model_forward.5} parent=0 // pred_check
    _
  $region31: #{model_forward.5} parent=0 // pred_check_branch
    %32 = sbr.rel (0) target = $region33
  $region32: #{model_forward.5} parent=0 // pred_region
    _
  $region33: #{model_forward.5} parent=0 // pred_fallthru
    _
  // Predicated region
  $region34: #{model_forward.5} parent=0 // pred_check
    _
  $region35: #{model_forward.5} parent=0 // pred_check_branch
    %34 = sbr.rel (0) target = $region37
  $region36: #{model_forward.5} parent=0 // pred_region
    _
  $region37: #{model_forward.5} parent=0 // pred_fallthru
    _
  // Predicated region
  $region38: #{model_forward.5} parent=0 // pred_check
    _
  $region39: #{model_forward.5} parent=0 // pred_check_branch
    %36 = sbr.rel (0) target = $region41
  $region40: #{model_forward.5} parent=0 // pred_region
    _
  $region41: #{model_forward.5} parent=0 // pred_fallthru
    _
  // Predicated region
  $region42: #{model_forward.5} parent=0 // pred_check
    _
  $region43: #{model_forward.5} parent=0 // pred_check_branch
    %38 = sbr.rel (0) target = $region45
  $region44: #{model_forward.5} parent=0 // pred_region
    _
  $region45: #{model_forward.5} parent=0 // pred_fallthru
    _
  // Predicated region
  $region46: #{model_forward.5} parent=0 // pred_check
    _
  $region47: #{model_forward.5} parent=0 // pred_check_branch
    %40 = sbr.rel (0) target = $region49
  $region48: #{model_forward.5} parent=0 // pred_region
    _
  $region49: #{model_forward.5} parent=0 // pred_fallthru
    _
  %v42 = vld [vmem:[%s1] sm:$0x1]
  %v43 = vld [vmem:[%s2] sm:$0x1]
  %v44 = vld [vmem:[%s3] sm:$0x1]
  %v45 = vld [vmem:[%s4] sm:$0x1]
  %v46 = vmul.f32 %v42, 0.125
  %v47 = vmul.f32 %v43, 0.125
  %v48 = vmul.f32 %v46, %v46
  %v49 = vsub.f32 %v47, %v48
  %v50 = vmax.f32 %v49, 0.0
  %v51 = vadd.f32 %v50, 1e-05
  %v52 = vrsqrt.pop %v51
  %v53 = vmul.f32 %v44, %v52
  %v54 = vmul.f32 %v46, %v53
  %v55 = vsub.f32 %v45, %v54
  %v56 = vld [vmem:[%s6] sm:$0x1]
  %v57 = vld [vmem:[%s7] sm:$0x1]
  %v58 = vld [vmem:[%s8] sm:$0x1]
  %v59 = vld [vmem:[%s9] sm:$0x1]
  %v60 = vmul.f32 %v56, 0.125
  %v61 = vmul.f32 %v57, 0.125
  %v62 = vmul.f32 %v60, %v60
  %v63 = vsub.f32 %v61, %v62
  %v64 = vmax.f32 %v63, 0.0
  %v65 = vadd.f32 %v64, 1e-05
  %v66 = vrsqrt.pop %v65
  %v67 = vmul.f32 %v58, %v66
  %v68 = vmul.f32 %v60, %v67
  %v69 = vsub.f32 %v59, %v68
  %v70 = vld [vmem:[%s0] sm:$0xf]
  %v71 = vunpack.c.l.bf16 %v70
  %v73 = vlaneseq
  %v74 = vshrl.u32 %v73, 7
  %v75 = vsub.s32 0, %v74
  %v76 = vrot.slane %v53, %v75
  %v78 = vmul.f32 %v71, %v76
  %v80 = vlaneseq
  %v81 = vshrl.u32 %v80, 7
  %v82 = vsub.s32 0, %v81
  %v83 = vrot.slane %v55, %v82
  %v85 = vadd.f32 %v78, %v83
  %v86 = vmax.f32 %v85, 0.0
  %v87 = vpack.c.bf16 %v86, %v86
  %v88 = vld [vmem:[%s5] sm:$0xf]
  %v89 = vld [vmem:[%s5 + $0x4] sm:$0xf]
  %v90 = vld [vmem:[%s5 + $0x8] sm:$0xf]
  %v91 = vld [vmem:[%s5 + $0xc] sm:$0xf]
  %v92 = vld [vmem:[%s5 + $0x10] sm:$0xf]
  %v93 = vld [vmem:[%s5 + $0x14] sm:$0xf]
  %v94 = vld [vmem:[%s5 + $0x18] sm:$0xf]
  %v95 = vld [vmem:[%s5 + $0x1c] sm:$0xf]
  %v96 = vld [vmem:[%s5 + $0x20] sm:$0xf]
  %v97 = vld [vmem:[%s5 + $0x24] sm:$0xf]
  %v98 = vld [vmem:[%s5 + $0x28] sm:$0xf]
  %v99 = vld [vmem:[%s5 + $0x2c] sm:$0xf]
  %v100 = vld [vmem:[%s5 + $0x30] sm:$0xf]
  %v101 = vld [vmem:[%s5 + $0x34] sm:$0xf]
  %v102 = vld [vmem:[%s5 + $0x38] sm:$0xf]
  %v103 = vld [vmem:[%s5 + $0x3c] sm:$0xf]
  %v120 = vunpack.c.l.b16 %v88
  %v121 = vunpack.c.l.b16 %v89
  %v122 = vunpack.c.l.b16 %v90
  %v123 = vunpack.c.l.b16 %v91
  %v124 = vunpack.c.l.b16 %v92
  %v125 = vunpack.c.l.b16 %v93
  %v126 = vunpack.c.l.b16 %v94
  %v127 = vunpack.c.l.b16 %v95
  %v128 = vunpack.c.l.b16 %v96
  %v129 = vunpack.c.l.b16 %v97
  %v130 = vunpack.c.l.b16 %v98
  %v131 = vunpack.c.l.b16 %v99
  %v132 = vunpack.c.l.b16 %v100
  %v133 = vunpack.c.l.b16 %v101
  %v134 = vunpack.c.l.b16 %v102
  %v135 = vunpack.c.l.b16 %v103
  %v136 = vpack.c.b16 %v121, %v120
  %v137 = vpack.c.b16 %v123, %v122
  %v138 = vpack.c.b16 %v125, %v124
  %v139 = vpack.c.b16 %v127, %v126
  %v140 = vpack.c.b16 %v129, %v128
  %v141 = vpack.c.b16 %v131, %v130
  %v142 = vpack.c.b16 %v133, %v132
  %v143 = vpack.c.b16 %v135, %v134
  %152 = vmatprep.subr.bf16.mxu0 0
  %153 = vmatpush1.bf16.msra.mxu0 %v136
  %154 = vmatprep.subr.bf16.mxu0 0
  %155 = vmatpush1.bf16.msra.mxu0 %v137
  %156 = vmatprep.subr.bf16.mxu0 0
  %157 = vmatpush1.bf16.msra.mxu0 %v138
  %158 = vmatprep.subr.bf16.mxu0 0
  %159 = vmatpush1.bf16.msra.mxu0 %v139
  %160 = vmatprep.subr.bf16.mxu0 0
  %161 = vmatpush1.bf16.msra.mxu0 %v140
  %162 = vmatprep.subr.bf16.mxu0 0
  %163 = vmatpush1.bf16.msra.mxu0 %v141
  %164 = vmatprep.subr.bf16.mxu0 0
  %165 = vmatpush1.bf16.msra.mxu0 %v142
  %166 = vmatprep.subr.bf16.mxu0 0
  %167 = vmatpush1.bf16.msra.mxu0 %v143
  %168 = vmatprep.subr.bf16.mxu0 0
  %169 = vmatpush1.bf16.msra.mxu0 0
  %170 = vmatprep.subr.bf16.mxu0 0
  %171 = vmatpush1.bf16.msra.mxu0 0
  %172 = vmatprep.subr.bf16.mxu0 0
  %173 = vmatpush1.bf16.msra.mxu0 0
  %174 = vmatprep.subr.bf16.mxu0 0
  %175 = vmatpush1.bf16.msra.mxu0 0
  %176 = vmatprep.subr.bf16.mxu0 0
  %177 = vmatpush1.bf16.msra.mxu0 0
  %178 = vmatprep.subr.bf16.mxu0 0
  %179 = vmatpush1.bf16.msra.mxu0 0
  %180 = vmatprep.subr.bf16.mxu0 0
  %181 = vmatpush1.bf16.msra.mxu0 0
  %182 = vmatprep.subr.bf16.mxu0 0
  %183 = vmatpush1.bf16.msra.mxu0 0
  %184 = vmatprep.mubr.bf16.mxu0 0
  %185 = vmatmul.mubr.bf16.gmra.mrb[0].mxu0 %v87
  %v186 = vpop.f32.mrb[0].mxu0
  %v187 = vadd.f32 0.0, %v186
  %v188 = vpop.f32.mrb[0].mxu0
  %v189 = vpop.f32.mrb[0].mxu0
  %v190 = vpop.f32.mrb[0].mxu0
  %191 = vdwg.mxu0
  %v193 = vlaneseq
  %v194 = vshrl.u32 %v193, 7
  %v195 = vsub.s32 0, %v194
  %v196 = vrot.slane %v67, %v195
  %v198 = vmul.f32 %v187, %v196
  %v200 = vlaneseq
  %v201 = vshrl.u32 %v200, 7
  %v202 = vsub.s32 0, %v201
  %v203 = vrot.slane %v69, %v202
  %v205 = vadd.f32 %v198, %v203
  %v206 = vmax.f32 %v205, 0.0
  %v207 = vpack.c.bf16 %v206, %v206
  %v208 = vld [vmem:[%s10] sm:$0xf]
  %v209 = vld [vmem:[%s10 + $0x4] sm:$0xf]
  %v210 = vld [vmem:[%s10 + $0x8] sm:$0xf]
  %v211 = vld [vmem:[%s10 + $0xc] sm:$0xf]
  %v212 = vld [vmem:[%s10 + $0x10] sm:$0xf]
  %v213 = vld [vmem:[%s10 + $0x14] sm:$0xf]
  %v214 = vld [vmem:[%s10 + $0x18] sm:$0xf]
  %v215 = vld [vmem:[%s10 + $0x1c] sm:$0xf]
  %v216 = vld [vmem:[%s10 + $0x20] sm:$0xf]
  %v217 = vld [vmem:[%s10 + $0x24] sm:$0xf]
  %v218 = vld [vmem:[%s10 + $0x28] sm:$0xf]
  %v219 = vld [vmem:[%s10 + $0x2c] sm:$0xf]
  %v220 = vld [vmem:[%s10 + $0x30] sm:$0xf]
  %v221 = vld [vmem:[%s10 + $0x34] sm:$0xf]
  %v222 = vld [vmem:[%s10 + $0x38] sm:$0xf]
  %v223 = vld [vmem:[%s10 + $0x3c] sm:$0xf]
  %v224 = vld [vmem:[%s11] sm:$0x1]
  %v226 = vlaneseq
  %v227 = vshrl.u32 %v226, 7
  %v228 = vsub.s32 0, %v227
  %v229 = vrot.slane %v224, %v228
  %v247 = vunpack.c.l.b16 %v208
  %v248 = vunpack.c.l.b16 %v209
  %v249 = vunpack.c.l.b16 %v210
  %v250 = vunpack.c.l.b16 %v211
  %v251 = vunpack.c.l.b16 %v212
  %v252 = vunpack.c.l.b16 %v213
  %v253 = vunpack.c.l.b16 %v214
  %v254 = vunpack.c.l.b16 %v215
  %v255 = vunpack.c.l.b16 %v216
  %v256 = vunpack.c.l.b16 %v217
  %v257 = vunpack.c.l.b16 %v218
  %v258 = vunpack.c.l.b16 %v219
  %v259 = vunpack.c.l.b16 %v220
  %v260 = vunpack.c.l.b16 %v221
  %v261 = vunpack.c.l.b16 %v222
  %v262 = vunpack.c.l.b16 %v223
  %v263 = vpack.c.b16 %v248, %v247
  %v264 = vpack.c.b16 %v250, %v249
  %v265 = vpack.c.b16 %v252, %v251
  %v266 = vpack.c.b16 %v254, %v253
  %v267 = vpack.c.b16 %v256, %v255
  %v268 = vpack.c.b16 %v258, %v257
  %v269 = vpack.c.b16 %v260, %v259
  %v270 = vpack.c.b16 %v262, %v261
  %279 = vmatprep.subr.bf16.mxu0 0
  %280 = vmatpush1.bf16.msra.mxu0 %v263
  %281 = vmatprep.subr.bf16.mxu0 0
  %282 = vmatpush1.bf16.msra.mxu0 %v264
  %283 = vmatprep.subr.bf16.mxu0 0
  %284 = vmatpush1.bf16.msra.mxu0 %v265
  %285 = vmatprep.subr.bf16.mxu0 0
  %286 = vmatpush1.bf16.msra.mxu0 %v266
  %287 = vmatprep.subr.bf16.mxu0 0
  %288 = vmatpush1.bf16.msra.mxu0 %v267
  %289 = vmatprep.subr.bf16.mxu0 0
  %290 = vmatpush1.bf16.msra.mxu0 %v268
  %291 = vmatprep.subr.bf16.mxu0 0
  %292 = vmatpush1.bf16.msra.mxu0 %v269
  %293 = vmatprep.subr.bf16.mxu0 0
  %294 = vmatpush1.bf16.msra.mxu0 %v270
  %295 = vmatprep.subr.bf16.mxu0 0
  %296 = vmatpush1.bf16.msra.mxu0 0
  %297 = vmatprep.subr.bf16.mxu0 0
  %298 = vmatpush1.bf16.msra.mxu0 0
  %299 = vmatprep.subr.bf16.mxu0 0
  %300 = vmatpush1.bf16.msra.mxu0 0
  %301 = vmatprep.subr.bf16.mxu0 0
  %302 = vmatpush1.bf16.msra.mxu0 0
  %303 = vmatprep.subr.bf16.mxu0 0
  %304 = vmatpush1.bf16.msra.mxu0 0
  %305 = vmatprep.subr.bf16.mxu0 0
  %306 = vmatpush1.bf16.msra.mxu0 0
  %307 = vmatprep.subr.bf16.mxu0 0
  %308 = vmatpush1.bf16.msra.mxu0 0
  %309 = vmatprep.subr.bf16.mxu0 0
  %310 = vmatpush1.bf16.msra.mxu0 0
  %311 = vmatprep.mubr.bf16.mxu0 0
  %312 = vmatmul.mubr.bf16.gmra.mrb[0].mxu0 %v207
  %v313 = vpop.f32.mrb[0].mxu0
  %v314 = vadd.f32 %v229, %v313
  %v315 = vpop.f32.mrb[0].mxu0
  %v316 = vpop.f32.mrb[0].mxu0
  %v317 = vpop.f32.mrb[0].mxu0
  %318 = vdwg.mxu0
  %vm319 = vcmask 64512
  %320 = vst.msk [vmem:[%s12] sm:$0xff] %vm319, %v314
  // Predicated region
  $region50: #{model_forward.5} parent=0 // pred_check
    _
  $region51: #{model_forward.5} parent=0 // pred_check_branch
    %322 = sbr.rel (0) target = $region53
  $region52: #{model_forward.5} parent=0 // pred_region
    _
  $region53: #{model_forward.5} parent=0 // pred_fallthru
    _
  // Predicated region
  $region54: #{model_forward.5} parent=0 // pred_check
    _
  $region55: #{model_forward.5} parent=0 // pred_check_branch
    %324 = sbr.rel (0) target = $region57
  $region56: #{model_forward.5} parent=0 // pred_region
    _
  $region57: #{model_forward.5} parent=0 // pred_fallthru
    _

// kernel: model_forward.3
$region0: #{model_forward.3}
  #allocation0 [shape = 'u32[]', space=smem, size = 0x4, offset = 0x4, fixed_abs, tag = 'smem constant byte address 0x4 - core index']
  #allocation1 [shape = 'u32[144,128]{1,0:T(1,128)}', space=vmem, size = 0x12000, scoped, tag = 'internal scratch']
  %s0 = inlined_call_operand.hbm [shape: f32[8,957], index: 0, kind: input, shape index: {}]
  %s1 = inlined_call_operand.hbm [shape: bf16[957,128], index: 1, kind: input, shape index: {}]
  %s2 = inlined_call_operand.vmem [shape: bf16[8,128], index: 2, kind: output, shape index: {0}]
  %s3 = inlined_call_operand.vmem [shape: f32[1,128], index: 3, kind: output, shape index: {1}]
  %s4 = inlined_call_operand.vmem [shape: f32[1,128], index: 4, kind: output, shape index: {2}]
  %5 = xla_tuple %s2, %s3, %s4
  %s6 = sld [smem:[#allocation0]]
  $region46: #{model_forward.3} parent=0
    _
  %s8 = ssub.s32 1, %s6
  %s9 = scalar_select 0, %s8, %s6
  $region1: #{model_forward.3} parent=0
    #allocation2 [shape = 'u8[32768]{0}', space=vmem, size = 0x8000, scoped, tag = 'input window, operand 0, single buffered']
    #allocation3 [shape = 's32[1]{0}', space=sflag, size = 0x4, scoped, tag = 'scoped memory for model_forward.3']
    #allocation4 [shape = 'u8[245760]{0}', space=vmem, size = 0x3c000, scoped, tag = 'input window, operand 1, single buffered']
    #allocation5 [shape = 's32[1]{0}', space=sflag, size = 0x4, scoped, tag = 'scoped memory for model_forward.3']
    %10 = vsyncpa [#allocation3], 0
    %11 = vsyncpa [#allocation5], 0
    // Predicated region
    $region2: #{model_forward.3} parent=1 // pred_check
      _
    $region3: #{model_forward.3} parent=1 // pred_check_branch
      %13 = sbr.rel (0) target = $region5
    $region4: #{model_forward.3} parent=1 // pred_region
      %s15 = ssub.s32 1024, 1024
      %16 = vsyncadd [#allocation3], %s15
      %s18 = sshll.u32 [#allocation2], 4
      %s19 = int_to_ptr.vmem [resolvable:$true] %s18
      %21 = dma.hbm_to_vmem [thread:$0]  %s0, 1024, %s19, [#allocation3]
    $region5: #{model_forward.3} parent=1 // pred_fallthru
      _
    // Predicated region
    $region6: #{model_forward.3} parent=1 // pred_check
      _
    $region7: #{model_forward.3} parent=1 // pred_check_branch
      %23 = sbr.rel (0) target = $region9
    $region8: #{model_forward.3} parent=1 // pred_region
      %s25 = ssub.s32 7680, 7680
      %26 = vsyncadd [#allocation5], %s25
      %s27 = sshll.u32 [#allocation4], 4
      %s28 = int_to_ptr.vmem [resolvable:$true] %s27
      %33 = dma.hbm_to_vmem [thread:$0]  %s1, 7680, %s28, [#allocation5], 64, 64, 4
    $region9: #{model_forward.3} parent=1 // pred_fallthru
      _
    // Predicated region
    $region10: #{model_forward.3} parent=1 // pred_check
      _
    $region11: #{model_forward.3} parent=1 // pred_check_branch
      %35 = sbr.rel (0) target = $region13
    $region12: #{model_forward.3} parent=1 // pred_region
      %36 = dma.done [#allocation3], 1024
    $region13: #{model_forward.3} parent=1 // pred_fallthru
      _
    // Predicated region
    $region14: #{model_forward.3} parent=1 // pred_check
      _
    $region15: #{model_forward.3} parent=1 // pred_check_branch
      %38 = sbr.rel (0) target = $region17
    $region16: #{model_forward.3} parent=1 // pred_region
      %39 = dma.done [#allocation5], 7680
    $region17: #{model_forward.3} parent=1 // pred_fallthru
      _
    %v41 = vld [vmem:[#allocation2] sm:$0xff]
    %v42 = vld [vmem:[#allocation2 + $0x8] sm:$0xff]
    %v43 = vld [vmem:[#allocation2 + $0x10] sm:$0xff]
    %v44 = vld [vmem:[#allocation2 + $0x18] sm:$0xff]
    %v45 = vld [vmem:[#allocation2 + $0x20] sm:$0xff]
    %v46 = vld [vmem:[#allocation2 + $0x28] sm:$0xff]
    %v47 = vld [vmem:[#allocation2 + $0x30] sm:$0xff]
    %v48 = vld [vmem:[#allocation2 + $0x38] sm:$0xff]
    %v49 = vpack.c.bf16 %v41, %v41
    %v50 = vpack.c.bf16 %v42, %v42
    %v51 = vpack.c.bf16 %v43, %v43
    %v52 = vpack.c.bf16 %v44, %v44
    %v53 = vpack.c.bf16 %v45, %v45
    %v54 = vpack.c.bf16 %v46, %v46
    %v55 = vpack.c.bf16 %v47, %v47
    %v56 = vpack.c.bf16 %v48, %v48
    %v57 = vld [vmem:[#allocation4] sm:$0xf]
    %v58 = vld [vmem:[#allocation4 + $0x4] sm:$0xf]
    %v59 = vld [vmem:[#allocation4 + $0x8] sm:$0xf]
    %v60 = vld [vmem:[#allocation4 + $0xc] sm:$0xf]
    %v61 = vld [vmem:[#allocation4 + $0x10] sm:$0xf]
    %v62 = vld [vmem:[#allocation4 + $0x14] sm:$0xf]
    %v63 = vld [vmem:[#allocation4 + $0x18] sm:$0xf]
    %v64 = vld [vmem:[#allocation4 + $0x1c] sm:$0xf]
    %v65 = vld [vmem:[#allocation4 + $0x20] sm:$0xf]
    %v66 = vld [vmem:[#allocation4 + $0x24] sm:$0xf]
    %v67 = vld [vmem:[#allocation4 + $0x28] sm:$0xf]
    %v68 = vld [vmem:[#allocation4 + $0x2c] sm:$0xf]
    %v69 = vld [vmem:[#allocation4 + $0x30] sm:$0xf]
    %v70 = vld [vmem:[#allocation4 + $0x34] sm:$0xf]
    %v71 = vld [vmem:[#allocation4 + $0x38] sm:$0xf]
    %v72 = vld [vmem:[#allocation4 + $0x3c] sm:$0xf]
    %v73 = vld [vmem:[#allocation4 + $0x40] sm:$0xf]
    %v74 = vld [vmem:[#allocation4 + $0x44] sm:$0xf]
    %v75 = vld [vmem:[#allocation4 + $0x48] sm:$0xf]
    %v76 = vld [vmem:[#allocation4 + $0x4c] sm:$0xf]
    %v77 = vld [vmem:[#allocation4 + $0x50] sm:$0xf]
    %v78 = vld [vmem:[#allocation4 + $0x54] sm:$0xf]
    %v79 = vld [vmem:[#allocation4 + $0x58] sm:$0xf]
    %v80 = vld [vmem:[#allocation4 + $0x5c] sm:$0xf]
    %v81 = vld [vmem:[#allocation4 + $0x60] sm:$0xf]
    %v82 = vld [vmem:[#allocation4 + $0x64] sm:$0xf]
    %v83 = vld [vmem:[#allocation4 + $0x68] sm:$0xf]
    %v84 = vld [vmem:[#allocation4 + $0x6c] sm:$0xf]
    %v85 = vld [vmem:[#allocation4 + $0x70] sm:$0xf]
    %v86 = vld [vmem:[#allocation4 + $0x74] sm:$0xf]
    %v87 = vld [vmem:[#allocation4 + $0x78] sm:$0xf]
    %v88 = vld [vmem:[#allocation4 + $0x7c] sm:$0xf]
    %v89 = vld [vmem:[#allocation4 + $0x80] sm:$0xf]
    %v90 = vld [vmem:[#allocation4 + $0x84] sm:$0xf]
    %v91 = vld [vmem:[#allocation4 + $0x88] sm:$0xf]
    %v92 = vld [vmem:[#allocation4 + $0x8c] sm:$0xf]
    %v93 = vld [vmem:[#allocation4 + $0x90] sm:$0xf]
    %v94 = vld [vmem:[#allocation4 + $0x94] sm:$0xf]
    %v95 = vld [vmem:[#allocation4 + $0x98] sm:$0xf]
    %v96 = vld [vmem:[#allocation4 + $0x9c] sm:$0xf]
    %v97 = vld [vmem:[#allocation4 + $0xa0] sm:$0xf]
    %v98 = vld [vmem:[#allocation4 + $0xa4] sm:$0xf]
    %v99 = vld [vmem:[#allocation4 + $0xa8] sm:$0xf]
    %v100 = vld [vmem:[#allocation4 + $0xac] sm:$0xf]
    %v101 = vld [vmem:[#allocation4 + $0xb0] sm:$0xf]
    %v102 = vld [vmem:[#allocation4 + $0xb4] sm:$0xf]
    %v103 = vld [vmem:[#allocation4 + $0xb8] sm:$0xf]
    %v104 = vld [vmem:[#allocation4 + $0xbc] sm:$0xf]
    %v105 = vld [vmem:[#allocation4 + $0xc0] sm:$0xf]
    %v106 = vld [vmem:[#allocation4 + $0xc4] sm:$0xf]
    %v107 = vld [vmem:[#allocation4 + $0xc8] sm:$0xf]
    %v108 = vld [vmem:[#allocation4 + $0xcc] sm:$0xf]
    %v109 = vld [vmem:[#allocation4 + $0xd0] sm:$0xf]
    %v110 = vld [vmem:[#allocation4 + $0xd4] sm:$0xf]
    %v111 = vld [vmem:[#allocation4 + $0xd8] sm:$0xf]
    %v112 = vld [vmem:[#allocation4 + $0xdc] sm:$0xf]
    %v113 = vld [vmem:[#allocation4 + $0xe0] sm:$0xf]
    %v114 = vld [vmem:[#allocation4 + $0xe4] sm:$0xf]
    %v115 = vld [vmem:[#allocation4 + $0xe8] sm:$0xf]
    %v116 = vld [vmem:[#allocation4 + $0xec] sm:$0xf]
    %v117 = vld [vmem:[#allocation4 + $0xf0] sm:$0xf]
    %v118 = vld [vmem:[#allocation4 + $0xf4] sm:$0xf]
    %v119 = vld [vmem:[#allocation4 + $0xf8] sm:$0xf]
    %v120 = vld [vmem:[#allocation4 + $0xfc] sm:$0xf]
    %v121 = vld [vmem:[#allocation4 + $0x100] sm:$0xf]
    %v122 = vld [vmem:[#allocation4 + $0x104] sm:$0xf]
    %v123 = vld [vmem:[#allocation4 + $0x108] sm:$0xf]
    %v124 = vld [vmem:[#allocation4 + $0x10c] sm:$0xf]
    %v125 = vld [vmem:[#allocation4 + $0x110] sm:$0xf]
    %v126 = vld [vmem:[#allocation4 + $0x114] sm:$0xf]
    %v127 = vld [vmem:[#allocation4 + $0x118] sm:$0xf]
    %v128 = vld [vmem:[#allocation4 + $0x11c] sm:$0xf]
    %v129 = vld [vmem:[#allocation4 + $0x120] sm:$0xf]
    %v130 = vld [vmem:[#allocation4 + $0x124] sm:$0xf]
    %v131 = vld [vmem:[#allocation4 + $0x128] sm:$0xf]
    %v132 = vld [vmem:[#allocation4 + $0x12c] sm:$0xf]
    %v133 = vld [vmem:[#allocation4 + $0x130] sm:$0xf]
    %v134 = vld [vmem:[#allocation4 + $0x134] sm:$0xf]
    %v135 = vld [vmem:[#allocation4 + $0x138] sm:$0xf]
    %v136 = vld [vmem:[#allocation4 + $0x13c] sm:$0xf]
    %v137 = vld [vmem:[#allocation4 + $0x140] sm:$0xf]
    %v138 = vld [vmem:[#allocation4 + $0x144] sm:$0xf]
    %v139 = vld [vmem:[#allocation4 + $0x148] sm:$0xf]
    %v140 = vld [vmem:[#allocation4 + $0x14c] sm:$0xf]
    %v141 = vld [vmem:[#allocation4 + $0x150] sm:$0xf]
    %v142 = vld [vmem:[#allocation4 + $0x154] sm:$0xf]
    %v143 = vld [vmem:[#allocation4 + $0x158] sm:$0xf]
    %v144 = vld [vmem:[#allocation4 + $0x15c] sm:$0xf]
    %v145 = vld [vmem:[#allocation4 + $0x160] sm:$0xf]
    %v146 = vld [vmem:[#allocation4 + $0x164] sm:$0xf]
    %v147 = vld [vmem:[#allocation4 + $0x168] sm:$0xf]
    %v148 = vld [vmem:[#allocation4 + $0x16c] sm:$0xf]
    %v149 = vld [vmem:[#allocation4 + $0x170] sm:$0xf]
    %v150 = vld [vmem:[#allocation4 + $0x174] sm:$0xf]
    %v151 = vld [vmem:[#allocation4 + $0x178] sm:$0xf]
    %v152 = vld [vmem:[#allocation4 + $0x17c] sm:$0xf]
    %v153 = vld [vmem:[#allocation4 + $0x180] sm:$0xf]
    %v154 = vld [vmem:[#allocation4 + $0x184] sm:$0xf]
    %v155 = vld [vmem:[#allocation4 + $0x188] sm:$0xf]
    %v156 = vld [vmem:[#allocation4 + $0x18c] sm:$0xf]
    %v157 = vld [vmem:[#allocation4 + $0x190] sm:$0xf]
    %v158 = vld [vmem:[#allocation4 + $0x194] sm:$0xf]
    %v159 = vld [vmem:[#allocation4 + $0x198] sm:$0xf]
    %v160 = vld [vmem:[#allocation4 + $0x19c] sm:$0xf]
    %v161 = vld [vmem:[#allocation4 + $0x1a0] sm:$0xf]
    %v162 = vld [vmem:[#allocation4 + $0x1a4] sm:$0xf]
    %v163 = vld [vmem:[#allocation4 + $0x1a8] sm:$0xf]
    %v164 = vld [vmem:[#allocation4 + $0x1ac] sm:$0xf]
    %v165 = vld [vmem:[#allocation4 + $0x1b0] sm:$0xf]
    %v166 = vld [vmem:[#allocation4 + $0x1b4] sm:$0xf]
    %v167 = vld [vmem:[#allocation4 + $0x1b8] sm:$0xf]
    %v168 = vld [vmem:[#allocation4 + $0x1bc] sm:$0xf]
    %v169 = vld [vmem:[#allocation4 + $0x1c0] sm:$0xf]
    %v170 = vld [vmem:[#allocation4 + $0x1c4] sm:$0xf]
    %v171 = vld [vmem:[#allocation4 + $0x1c8] sm:$0xf]
    %v172 = vld [vmem:[#allocation4 + $0x1cc] sm:$0xf]
    %v173 = vld [vmem:[#allocation4 + $0x1d0] sm:$0xf]
    %v174 = vld [vmem:[#allocation4 + $0x1d4] sm:$0xf]
    %v175 = vld [vmem:[#allocation4 + $0x1d8] sm:$0xf]
    %v176 = vld [vmem:[#allocation4 + $0x1dc] sm:$0x7]
    %v297 = vunpack.c.l.b16 %v57
    %v298 = vunpack.c.l.b16 %v58
    %v299 = vunpack.c.l.b16 %v59
    %v300 = vunpack.c.l.b16 %v60
    %v301 = vunpack.c.l.b16 %v61
    %v302 = vunpack.c.l.b16 %v62
    %v303 = vunpack.c.l.b16 %v63
    %v304 = vunpack.c.l.b16 %v64
    %v305 = vunpack.c.l.b16 %v65
    %v306 = vunpack.c.l.b16 %v66
    %v307 = vunpack.c.l.b16 %v67
    %v308 = vunpack.c.l.b16 %v68
    %v309 = vunpack.c.l.b16 %v69
    %v310 = vunpack.c.l.b16 %v70
    %v311 = vunpack.c.l.b16 %v71
    %v312 = vunpack.c.l.b16 %v72
    %v313 = vunpack.c.l.b16 %v73
    %v314 = vunpack.c.l.b16 %v74
    %v315 = vunpack.c.l.b16 %v75
    %v316 = vunpack.c.l.b16 %v76
    %v317 = vunpack.c.l.b16 %v77
    %v318 = vunpack.c.l.b16 %v78
    %v319 = vunpack.c.l.b16 %v79
    %v320 = vunpack.c.l.b16 %v80
    %v321 = vunpack.c.l.b16 %v81
    %v322 = vunpack.c.l.b16 %v82
    %v323 = vunpack.c.l.b16 %v83
    %v324 = vunpack.c.l.b16 %v84
    %v325 = vunpack.c.l.b16 %v85
    %v326 = vunpack.c.l.b16 %v86
    %v327 = vunpack.c.l.b16 %v87
    %v328 = vunpack.c.l.b16 %v88
    %v329 = vunpack.c.l.b16 %v89
    %v330 = vunpack.c.l.b16 %v90
    %v331 = vunpack.c.l.b16 %v91
    %v332 = vunpack.c.l.b16 %v92
    %v333 = vunpack.c.l.b16 %v93
    %v334 = vunpack.c.l.b16 %v94
    %v335 = vunpack.c.l.b16 %v95
    %v336 = vunpack.c.l.b16 %v96
    %v337 = vunpack.c.l.b16 %v97
    %v338 = vunpack.c.l.b16 %v98
    %v339 = vunpack.c.l.b16 %v99
    %v340 = vunpack.c.l.b16 %v100
    %v341 = vunpack.c.l.b16 %v101
    %v342 = vunpack.c.l.b16 %v102
    %v343 = vunpack.c.l.b16 %v103
    %v344 = vunpack.c.l.b16 %v104
    %v345 = vunpack.c.l.b16 %v105
    %v346 = vunpack.c.l.b16 %v106
    %v347 = vunpack.c.l.b16 %v107
    %v348 = vunpack.c.l.b16 %v108
    %v349 = vunpack.c.l.b16 %v109
    %v350 = vunpack.c.l.b16 %v110
    %v351 = vunpack.c.l.b16 %v111
    %v352 = vunpack.c.l.b16 %v112
    %v353 = vunpack.c.l.b16 %v113
    %v354 = vunpack.c.l.b16 %v114
    %v355 = vunpack.c.l.b16 %v115
    %v356 = vunpack.c.l.b16 %v116
    %v357 = vunpack.c.l.b16 %v117
    %v358 = vunpack.c.l.b16 %v118
    %v359 = vunpack.c.l.b16 %v119
    %v360 = vunpack.c.l.b16 %v120
    %v361 = vunpack.c.l.b16 %v121
    %v362 = vunpack.c.l.b16 %v122
    %v363 = vunpack.c.l.b16 %v123
    %v364 = vunpack.c.l.b16 %v124
    %v365 = vunpack.c.l.b16 %v125
    %v366 = vunpack.c.l.b16 %v126
    %v367 = vunpack.c.l.b16 %v127
    %v368 = vunpack.c.l.b16 %v128
    %v369 = vunpack.c.l.b16 %v129
    %v370 = vunpack.c.l.b16 %v130
    %v371 = vunpack.c.l.b16 %v131
    %v372 = vunpack.c.l.b16 %v132
    %v373 = vunpack.c.l.b16 %v133
    %v374 = vunpack.c.l.b16 %v134
    %v375 = vunpack.c.l.b16 %v135
    %v376 = vunpack.c.l.b16 %v136
    %v377 = vunpack.c.l.b16 %v137
    %v378 = vunpack.c.l.b16 %v138
    %v379 = vunpack.c.l.b16 %v139
    %v380 = vunpack.c.l.b16 %v140
    %v381 = vunpack.c.l.b16 %v141
    %v382 = vunpack.c.l.b16 %v142
    %v383 = vunpack.c.l.b16 %v143
    %v384 = vunpack.c.l.b16 %v144
    %v385 = vunpack.c.l.b16 %v145
    %v386 = vunpack.c.l.b16 %v146
    %v387 = vunpack.c.l.b16 %v147
    %v388 = vunpack.c.l.b16 %v148
    %v389 = vunpack.c.l.b16 %v149
    %v390 = vunpack.c.l.b16 %v150
    %v391 = vunpack.c.l.b16 %v151
    %v392 = vunpack.c.l.b16 %v152
    %v393 = vunpack.c.l.b16 %v153
    %v394 = vunpack.c.l.b16 %v154
    %v395 = vunpack.c.l.b16 %v155
    %v396 = vunpack.c.l.b16 %v156
    %v397 = vunpack.c.l.b16 %v157
    %v398 = vunpack.c.l.b16 %v158
    %v399 = vunpack.c.l.b16 %v159
    %v400 = vunpack.c.l.b16 %v160
    %v401 = vunpack.c.l.b16 %v161
    %v402 = vunpack.c.l.b16 %v162
    %v403 = vunpack.c.l.b16 %v163
    %v404 = vunpack.c.l.b16 %v164
    %v405 = vunpack.c.l.b16 %v165
    %v406 = vunpack.c.l.b16 %v166
    %v407 = vunpack.c.l.b16 %v167
    %v408 = vunpack.c.l.b16 %v168
    %v409 = vunpack.c.l.b16 %v169
    %v410 = vunpack.c.l.b16 %v170
    %v411 = vunpack.c.l.b16 %v171
    %v412 = vunpack.c.l.b16 %v172
    %v413 = vunpack.c.l.b16 %v173
    %v414 = vunpack.c.l.b16 %v174
    %v415 = vunpack.c.l.b16 %v175
    %v416 = vunpack.c.l.b16 %v176
    %v417 = vpack.c.b16 %v298, %v297
    %v418 = vpack.c.b16 %v300, %v299
    %v419 = vpack.c.b16 %v302, %v301
    %v420 = vpack.c.b16 %v304, %v303
    %v421 = vpack.c.b16 %v306, %v305
    %v422 = vpack.c.b16 %v308, %v307
    %v423 = vpack.c.b16 %v310, %v309
    %v424 = vpack.c.b16 %v312, %v311
    %v425 = vpack.c.b16 %v314, %v313
    %v426 = vpack.c.b16 %v316, %v315
    %v427 = vpack.c.b16 %v318, %v317
    %v428 = vpack.c.b16 %v320, %v319
    %v429 = vpack.c.b16 %v322, %v321
    %v430 = vpack.c.b16 %v324, %v323
    %v431 = vpack.c.b16 %v326, %v325
    %v432 = vpack.c.b16 %v328, %v327
    %v433 = vpack.c.b16 %v330, %v329
    %v434 = vpack.c.b16 %v332, %v331
    %v435 = vpack.c.b16 %v334, %v333
    %v436 = vpack.c.b16 %v336, %v335
    %v437 = vpack.c.b16 %v338, %v337
    %v438 = vpack.c.b16 %v340, %v339
    %v439 = vpack.c.b16 %v342, %v341
    %v440 = vpack.c.b16 %v344, %v343
    %v441 = vpack.c.b16 %v346, %v345
    %v442 = vpack.c.b16 %v348, %v347
    %v443 = vpack.c.b16 %v350, %v349
    %v444 = vpack.c.b16 %v352, %v351
    %v445 = vpack.c.b16 %v354, %v353
    %v446 = vpack.c.b16 %v356, %v355
    %v447 = vpack.c.b16 %v358, %v357
    %v448 = vpack.c.b16 %v360, %v359
    %v449 = vpack.c.b16 %v362, %v361
    %v450 = vpack.c.b16 %v364, %v363
    %v451 = vpack.c.b16 %v366, %v365
    %v452 = vpack.c.b16 %v368, %v367
    %v453 = vpack.c.b16 %v370, %v369
    %v454 = vpack.c.b16 %v372, %v371
    %v455 = vpack.c.b16 %v374, %v373
    %v456 = vpack.c.b16 %v376, %v375
    %v457 = vpack.c.b16 %v378, %v377
    %v458 = vpack.c.b16 %v380, %v379
    %v459 = vpack.c.b16 %v382, %v381
    %v460 = vpack.c.b16 %v384, %v383
    %v461 = vpack.c.b16 %v386, %v385
    %v462 = vpack.c.b16 %v388, %v387
    %v463 = vpack.c.b16 %v390, %v389
    %v464 = vpack.c.b16 %v392, %v391
    %v465 = vpack.c.b16 %v394, %v393
    %v466 = vpack.c.b16 %v396, %v395
    %v467 = vpack.c.b16 %v398, %v397
    %v468 = vpack.c.b16 %v400, %v399
    %v469 = vpack.c.b16 %v402, %v401
    %v470 = vpack.c.b16 %v404, %v403
    %v471 = vpack.c.b16 %v406, %v405
    %v472 = vpack.c.b16 %v408, %v407
    %v473 = vpack.c.b16 %v410, %v409
    %v474 = vpack.c.b16 %v412, %v411
    %v475 = vpack.c.b16 %v414, %v413
    %v476 = vpack.c.b16 %v416, %v415
    %vm536 = vcmask 498688
    %v538 = vsel %vm536, %v56, 0
    %vm540 = vcmask 1045504
    %vm541 = vcmask 1046528
    %v542 = vsel %vm540, 4294967295, 65535
    %v543 = vsel %vm541, %v542, 0
    %v545 = vand.u32 %v476, %v543
    %547 = vmatprep.subr.bf16.mxu0 0
    %548 = vmatpush1.bf16.msra.mxu0 %v417
    %549 = vmatprep.subr.bf16.mxu0 0
    %550 = vmatpush1.bf16.msra.mxu0 %v418
    %551 = vmatprep.subr.bf16.mxu0 0
    %552 = vmatpush1.bf16.msra.mxu0 %v419
    %553 = vmatprep.subr.bf16.mxu0 0
    %554 = vmatpush1.bf16.msra.mxu0 %v420
    %555 = vmatprep.subr.bf16.mxu0 0
    %556 = vmatpush1.bf16.msra.mxu0 %v421
    %557 = vmatprep.subr.bf16.mxu0 0
    %558 = vmatpush1.bf16.msra.mxu0 %v422
    %559 = vmatprep.subr.bf16.mxu0 0
    %560 = vmatpush1.bf16.msra.mxu0 %v423
    %561 = vmatprep.subr.bf16.mxu0 0
    %562 = vmatpush1.bf16.msra.mxu0 %v424
    %563 = vmatprep.subr.bf16.mxu0 0
    %564 = vmatpush1.bf16.msra.mxu0 %v425
    %565 = vmatprep.subr.bf16.mxu0 0
    %566 = vmatpush1.bf16.msra.mxu0 %v426
    %567 = vmatprep.subr.bf16.mxu0 0
    %568 = vmatpush1.bf16.msra.mxu0 %v427
    %569 = vmatprep.subr.bf16.mxu0 0
    %570 = vmatpush1.bf16.msra.mxu0 %v428
    %571 = vmatprep.subr.bf16.mxu0 0
    %572 = vmatpush1.bf16.msra.mxu0 %v429
    %573 = vmatprep.subr.bf16.mxu0 0
    %574 = vmatpush1.bf16.msra.mxu0 %v430
    %575 = vmatprep.subr.bf16.mxu0 0
    %576 = vmatpush1.bf16.msra.mxu0 %v431
    %577 = vmatprep.subr.bf16.mxu0 0
    %578 = vmatpush1.bf16.msra.mxu0 %v432
    %579 = vmatprep.mubr.bf16.mxu0 %v50
    %580 = vmatmul.mubr.bf16.gmra.mrb[0].mxu0 %v49
    %v581 = vpop.f32.mrb[0].mxu0
    %v582 = vadd.f32 0.0, %v581
    %v583 = vpop.f32.mrb[0].mxu0
    %v584 = vpop.f32.mrb[0].mxu0
    %v585 = vpop.f32.mrb[0].mxu0
    %586 = vdwg.mxu0
    %587 = vmatprep.subr.bf16.mxu0 0
    %588 = vmatpush1.bf16.msra.mxu0 %v433
    %589 = vmatprep.subr.bf16.mxu0 0
    %590 = vmatpush1.bf16.msra.mxu0 %v434
    %591 = vmatprep.subr.bf16.mxu0 0
    %592 = vmatpush1.bf16.msra.mxu0 %v435
    %593 = vmatprep.subr.bf16.mxu0 0
    %594 = vmatpush1.bf16.msra.mxu0 %v436
    %595 = vmatprep.subr.bf16.mxu0 0
    %596 = vmatpush1.bf16.msra.mxu0 %v437
    %597 = vmatprep.subr.bf16.mxu0 0
    %598 = vmatpush1.bf16.msra.mxu0 %v438
    %599 = vmatprep.subr.bf16.mxu0 0
    %600 = vmatpush1.bf16.msra.mxu0 %v439
    %601 = vmatprep.subr.bf16.mxu0 0
    %602 = vmatpush1.bf16.msra.mxu0 %v440
    %603 = vmatprep.subr.bf16.mxu0 0
    %604 = vmatpush1.bf16.msra.mxu0 %v441
    %605 = vmatprep.subr.bf16.mxu0 0
    %606 = vmatpush1.bf16.msra.mxu0 %v442
    %607 = vmatprep.subr.bf16.mxu0 0
    %608 = vmatpush1.bf16.msra.mxu0 %v443
    %609 = vmatprep.subr.bf16.mxu0 0
    %610 = vmatpush1.bf16.msra.mxu0 %v444
    %611 = vmatprep.subr.bf16.mxu0 0
    %612 = vmatpush1.bf16.msra.mxu0 %v445
    %613 = vmatprep.subr.bf16.mxu0 0
    %614 = vmatpush1.bf16.msra.mxu0 %v446
    %615 = vmatprep.subr.bf16.mxu0 0
    %616 = vmatpush1.bf16.msra.mxu0 %v447
    %617 = vmatprep.subr.bf16.mxu0 0
    %618 = vmatpush1.bf16.msra.mxu0 %v448
    %619 = vmatprep.mubr.bf16.mxu0 %v52
    %620 = vmatmul.mubr.bf16.gmra.mrb[0].mxu0 %v51
    %v621 = vpop.f32.mrb[0].mxu0
    %v622 = vadd.f32 %v582, %v621
    %v623 = vpop.f32.mrb[0].mxu0
    %v624 = vpop.f32.mrb[0].mxu0
    %v625 = vpop.f32.mrb[0].mxu0
    %626 = vdwg.mxu0
    %627 = vmatprep.subr.bf16.mxu0 0
    %628 = vmatpush1.bf16.msra.mxu0 %v449
    %629 = vmatprep.subr.bf16.mxu0 0
    %630 = vmatpush1.bf16.msra.mxu0 %v450
    %631 = vmatprep.subr.bf16.mxu0 0
    %632 = vmatpush1.bf16.msra.mxu0 %v451
    %633 = vmatprep.subr.bf16.mxu0 0
    %634 = vmatpush1.bf16.msra.mxu0 %v452
    %635 = vmatprep.subr.bf16.mxu0 0
    %636 = vmatpush1.bf16.msra.mxu0 %v453
    %637 = vmatprep.subr.bf16.mxu0 0
    %638 = vmatpush1.bf16.msra.mxu0 %v454
    %639 = vmatprep.subr.bf16.mxu0 0
    %640 = vmatpush1.bf16.msra.mxu0 %v455
    %641 = vmatprep.subr.bf16.mxu0 0
    %642 = vmatpush1.bf16.msra.mxu0 %v456
    %643 = vmatprep.subr.bf16.mxu0 0
    %644 = vmatpush1.bf16.msra.mxu0 %v457
    %645 = vmatprep.subr.bf16.mxu0 0
    %646 = vmatpush1.bf16.msra.mxu0 %v458
    %647 = vmatprep.subr.bf16.mxu0 0
    %648 = vmatpush1.bf16.msra.mxu0 %v459
    %649 = vmatprep.subr.bf16.mxu0 0
    %650 = vmatpush1.bf16.msra.mxu0 %v460
    %651 = vmatprep.subr.bf16.mxu0 0
    %652 = vmatpush1.bf16.msra.mxu0 %v461
    %653 = vmatprep.subr.bf16.mxu0 0
    %654 = vmatpush1.bf16.msra.mxu0 %v462
    %655 = vmatprep.subr.bf16.mxu0 0
    %656 = vmatpush1.bf16.msra.mxu0 %v463
    %657 = vmatprep.subr.bf16.mxu0 0
    %658 = vmatpush1.bf16.msra.mxu0 %v464
    %659 = vmatprep.mubr.bf16.mxu0 %v54
    %660 = vmatmul.mubr.bf16.gmra.mrb[0].mxu0 %v53
    %v661 = vpop.f32.mrb[0].mxu0
    %v662 = vadd.f32 %v622, %v661
    %v663 = vpop.f32.mrb[0].mxu0
    %v664 = vpop.f32.mrb[0].mxu0
    %v665 = vpop.f32.mrb[0].mxu0
    %666 = vdwg.mxu0
    %667 = vmatprep.subr.bf16.mxu0 0
    %668 = vmatpush1.bf16.msra.mxu0 %v465
    %669 = vmatprep.subr.bf16.mxu0 0
    %670 = vmatpush1.bf16.msra.mxu0 %v466
    %671 = vmatprep.subr.bf16.mxu0 0
    %672 = vmatpush1.bf16.msra.mxu0 %v467
    %673 = vmatprep.subr.bf16.mxu0 0
    %674 = vmatpush1.bf16.msra.mxu0 %v468
    %675 = vmatprep.subr.bf16.mxu0 0
    %676 = vmatpush1.bf16.msra.mxu0 %v469
    %677 = vmatprep.subr.bf16.mxu0 0
    %678 = vmatpush1.bf16.msra.mxu0 %v470
    %679 = vmatprep.subr.bf16.mxu0 0
    %680 = vmatpush1.bf16.msra.mxu0 %v471
    %681 = vmatprep.subr.bf16.mxu0 0
    %682 = vmatpush1.bf16.msra.mxu0 %v472
    %683 = vmatprep.subr.bf16.mxu0 0
    %684 = vmatpush1.bf16.msra.mxu0 %v473
    %685 = vmatprep.subr.bf16.mxu0 0
    %686 = vmatpush1.bf16.msra.mxu0 %v474
    %687 = vmatprep.subr.bf16.mxu0 0
    %688 = vmatpush1.bf16.msra.mxu0 %v475
    %689 = vmatprep.subr.bf16.mxu0 0
    %690 = vmatpush1.bf16.msra.mxu0 %v545
    %691 = vmatprep.subr.bf16.mxu0 0
    %692 = vmatpush1.bf16.msra.mxu0 0
    %693 = vmatprep.subr.bf16.mxu0 0
    %694 = vmatpush1.bf16.msra.mxu0 0
    %695 = vmatprep.subr.bf16.mxu0 0
    %696 = vmatpush1.bf16.msra.mxu0 0
    %697 = vmatprep.subr.bf16.mxu0 0
    %698 = vmatpush1.bf16.msra.mxu0 0
    %699 = vmatprep.mubr.bf16.mxu0 %v538
    %700 = vmatmul.mubr.bf16.gmra.mrb[0].mxu0 %v55
    %v701 = vpop.f32.mrb[0].mxu0
    %v702 = vadd.f32 %v662, %v701
    %v703 = vpop.f32.mrb[0].mxu0
    %v704 = vpop.f32.mrb[0].mxu0
    %v705 = vpop.f32.mrb[0].mxu0
    %706 = vdwg.mxu0
    %v707 = vpack.c.bf16 %v702, %v702
    %708 = vst [vmem:[%s2] sm:$0xf] %v707
    %p709 = scmp.eq.s32.totalorder 0, 0
    // Predicated region
    $region18: #{model_forward.3} parent=1 // pred_check
      %p710 = pneg %p709
    $region19: #{model_forward.3} parent=1 // pred_check_branch
      %712 = sbr.rel (%p710) target = $region21
    $region20: #{model_forward.3} parent=1 // pred_region
      %713 = vst [vmem:[%s3] sm:$0x1] 0.0
      %714 = vst [vmem:[%s4] sm:$0x1] 0.0
    $region21: #{model_forward.3} parent=1 // pred_fallthru
      _
    %v715 = vld [vmem:[%s3] sm:$0x1]
    %v716 = vrot.slane %v702, 4
    %v717 = vadd.f32 %v702, %v716
    %v718 = vrot.slane %v717, 2
    %v719 = vadd.f32 %v717, %v718
    %v720 = vrot.slane %v719, 1
    %v721 = vadd.f32 %v719, %v720
    %v722 = vadd.f32 %v715, %v721
    %723 = vst [vmem:[%s3] sm:$0x1] %v722
    %v724 = vld [vmem:[%s4] sm:$0x1]
    %v725 = vmul.f32 %v702, %v702
    %v726 = vrot.slane %v725, 4
    %v727 = vadd.f32 %v725, %v726
    %v728 = vrot.slane %v727, 2
    %v729 = vadd.f32 %v727, %v728
    %v730 = vrot.slane %v729, 1
    %v731 = vadd.f32 %v729, %v730
    %v732 = vadd.f32 %v724, %v731
    %733 = vst [vmem:[%s4] sm:$0x1] %v732
    // Predicated region
    $region22: #{model_forward.3} parent=1 // pred_check
      _
    $region23: #{model_forward.3} parent=1 // pred_check_branch
      %735 = sbr.rel (0) target = $region25
    $region24: #{model_forward.3} parent=1 // pred_region
      _
    $region25: #{model_forward.3} parent=1 // pred_fallthru
      _
    // Predicated region
    $region26: #{model_forward.3} parent=1 // pred_check
      _
    $region27: #{model_forward.3} parent=1 // pred_check_branch
      %737 = sbr.rel (0) target = $region29
    $region28: #{model_forward.3} parent=1 // pred_region
      _
    $region29: #{model_forward.3} parent=1 // pred_fallthru
      _
    // Predicated region
    $region30: #{model_forward.3} parent=1 // pred_check
      _
    $region31: #{model_forward.3} parent=1 // pred_check_branch
      %739 = sbr.rel (0) target = $region33
    $region32: #{model_forward.3} parent=1 // pred_region
      _
    $region33: #{model_forward.3} parent=1 // pred_fallthru
      _
    // Predicated region
    $region34: #{model_forward.3} parent=1 // pred_check
      _
    $region35: #{model_forward.3} parent=1 // pred_check_branch
      %741 = sbr.rel (0) target = $region37
    $region36: #{model_forward.3} parent=1 // pred_region
      _
    $region37: #{model_forward.3} parent=1 // pred_fallthru
      _
    // Predicated region
    $region38: #{model_forward.3} parent=1 // pred_check
      _
    $region39: #{model_forward.3} parent=1 // pred_check_branch
      %743 = sbr.rel (0) target = $region41
    $region40: #{model_forward.3} parent=1 // pred_region
      _
    $region41: #{model_forward.3} parent=1 // pred_fallthru
      _
    // Predicated region
    $region42: #{model_forward.3} parent=1 // pred_check
      _
    $region43: #{model_forward.3} parent=1 // pred_check_branch
      %745 = sbr.rel (0) target = $region45
    $region44: #{model_forward.3} parent=1 // pred_region
      _
    $region45: #{model_forward.3} parent=1 // pred_fallthru
      _
    %746 = vsyncpa [#allocation3], 1
    %747 = vsyncpa [#allocation5], 1

</llo_original>
